<compile_context>
chip_gen: v7x
topology: tpu7x:2x2x1
jax: 0.10.0
libtpu: 0.0.40
codegen_flags: <defaults>
</compile_context>

<pallas_src>
import functools

import jax
import jax.numpy as jnp
import numpy as np
from jax import lax
from jax.experimental import pallas as pl
from jax.experimental.pallas import tpu as pltpu


def _layernorm(x, gamma, beta, eps=1e-5):
    # x: (tq, C); gamma/beta: (C,)
    mean = jnp.mean(x, axis=-1, keepdims=True)
    var = jnp.mean((x - mean) ** 2, axis=-1, keepdims=True)
    return (x - mean) * lax.rsqrt(var + eps) * gamma + beta


def transformer_block_kernel(
    xq_ref, xkv_ref,
    wq_ref, wk_ref, wv_ref, wp_ref, bp_ref,
    w1_ref, b1_ref, w2_ref, b2_ref,
    g1_ref, be1_ref, g2_ref, be2_ref,
    out_ref, *, num_head, head_size, tq, h_chunk,
):
    T = xkv_ref.shape[1]
    C = xq_ref.shape[2]
    H = w1_ref.shape[1]

    x_q = xq_ref[0].astype(jnp.float32)           # (tq, C) residual path stays f32
    x_q_bf = x_q.astype(jnp.bfloat16)
    x_kv_bf = xkv_ref[0].astype(jnp.bfloat16)     # (T, C)

    # Fused head projections: bf16 operands on the MXU, f32 accumulation.
    q = jnp.dot(x_q_bf, wq_ref[...], preferred_element_type=jnp.float32)   # (tq, C)
    k = jnp.dot(x_kv_bf, wk_ref[...], preferred_element_type=jnp.float32)  # (T, C)
    v = jnp.dot(x_kv_bf, wv_ref[...], preferred_element_type=jnp.float32)  # (T, C)
    q_bf = q.astype(jnp.bfloat16)
    k_bf = k.astype(jnp.bfloat16)
    v_bf = v.astype(jnp.bfloat16)
    wp = wp_ref[...]                              # (C, C) bf16

    # Causal mask built in-kernel (pure VPU work, hidden under the MXU).
    q0 = pl.program_id(1) * tq
    row_ids = q0 + lax.broadcasted_iota(jnp.int32, (tq, T), 0)
    col_ids = lax.broadcasted_iota(jnp.int32, (tq, T), 1)
    neg_mask = jnp.where(col_ids <= row_ids, 0.0, -1e30).astype(jnp.float32)

    scale = float(head_size) ** 0.5               # NOTE: multiply (matches reference module)
    contract_last = (((1,), (1,)), ((), ()))      # contract last dim of both (no transpose)

    # Per-head attention, accumulated directly into the projected output (no concat).
    y = jnp.zeros((tq, C), jnp.float32)
    for h in range(num_head):                     # static unrolled loop, static slices
        sl = slice(h * head_size, (h + 1) * head_size)
        qh, kh, vh = q_bf[:, sl], k_bf[:, sl], v_bf[:, sl]
        wei = lax.dot_general(qh, kh, contract_last,
                              preferred_element_type=jnp.float32) * scale + neg_mask
        wei = wei - jnp.max(wei, axis=-1, keepdims=True)
        e = jnp.exp(wei)
        inv = pl.reciprocal(jnp.sum(e, axis=-1, keepdims=True), approx=True)
        p = (e * inv).astype(jnp.bfloat16)
        oh = jnp.dot(p, vh, preferred_element_type=jnp.float32)            # (tq, hs)
        y = y + jnp.dot(oh.astype(jnp.bfloat16), wp[sl, :],
                        preferred_element_type=jnp.float32)                # (tq, C)
    y = y + bp_ref[0].astype(jnp.float32)

    # residual + LayerNorm 1
    h1 = _layernorm(x_q + y, g1_ref[0].astype(jnp.float32), be1_ref[0].astype(jnp.float32))
    h1_bf = h1.astype(jnp.bfloat16)

    # FFN: Linear -> ReLU -> Linear, hidden dim chunked so the (tq, H) intermediate
    # is never materialized whole (keeps vst pressure / VMEM bounded).
    acc = jnp.zeros((tq, C), jnp.float32)
    n_chunks = -(-H // h_chunk)
    for ci in range(n_chunks):
        s0 = ci * h_chunk
        s1 = min(H, s0 + h_chunk)
        fc = jnp.dot(h1_bf, w1_ref[:, s0:s1], preferred_element_type=jnp.float32)
        fc = jnp.maximum(fc + b1_ref[0, s0:s1].astype(jnp.float32), 0.0)
        acc = acc + jnp.dot(fc.astype(jnp.bfloat16), w2_ref[s0:s1, :],
                            preferred_element_type=jnp.float32)
    f = acc + b2_ref[0].astype(jnp.float32)

    # residual + LayerNorm 2
    h2 = _layernorm(h1 + f, g2_ref[0].astype(jnp.float32), be2_ref[0].astype(jnp.float32))
    out_ref[0] = h2.astype(out_ref.dtype)


def _pick_q_tile(T):
    for cand in (256, 128, 64, 32, 16, 8):
        if T % cand == 0:
            return cand
    return T


def transformer_block(x, params, *, num_head, head_size):
    B, T, C = x.shape
    (wq, wk, wv, wp, bp, w1, b1, w2, b2, g1, be1, g2, be2) = params
    H = w1.shape[1]
    tq = _pick_q_tile(T)
    n_qt = T // tq
    h_chunk = min(H, 512)

    # Matmul weights go to HBM as bf16 (half the DMA bytes, native MXU dtype);
    # biases and LayerNorm params stay f32 (added after f32 accumulation).
    bf = lambda a: a.astype(jnp.bfloat16)
    args = (x, x, bf(wq), bf(wk), bf(wv), bf(wp), bp,
            bf(w1), b1, bf(w2), b2, g1, be1, g2, be2)

    kernel = functools.partial(
        transformer_block_kernel, num_head=num_head, head_size=head_size,
        tq=tq, h_chunk=h_chunk)

    def rep(shape):  # replicated (whole-array) block for parameters
        return pl.BlockSpec(shape, lambda b, qi: tuple(0 for _ in shape))

    in_specs = [
        pl.BlockSpec((1, tq, C), lambda b, qi: (b, qi, 0)),   # x (query rows)
        pl.BlockSpec((1, T, C), lambda b, qi: (b, 0, 0)),     # x (full seq for K/V)
        rep((C, C)), rep((C, C)), rep((C, C)),                # Wq, Wk, Wv
        rep((C, C)), rep((1, C)),                             # Wproj, bproj
        rep((C, H)), rep((1, H)),                             # W1, b1
        rep((H, C)), rep((1, C)),                             # W2, b2
        rep((1, C)), rep((1, C)),                             # ln1 gamma, beta
        rep((1, C)), rep((1, C)),                             # ln2 gamma, beta
    ]
    out_specs = pl.BlockSpec((1, tq, C), lambda b, qi: (b, qi, 0))

    # Advisory cost estimate for XLA's scheduler.
    flops = B * (8 * T * C * C + 4 * T * T * C + 4 * T * C * H)
    transcendentals = B * num_head * T * T
    weight_bytes = sum(int(np.prod(a.shape)) * a.dtype.itemsize for a in args[2:])
    bytes_accessed = 3 * x.size * x.dtype.itemsize + weight_bytes

    # Explicit scoped-VMEM budget from the actual tile sizes (with margin), clamped
    # so it stays safe on v7x's 64 MiB physical VMEM.
    vmem_need = 2 * ((2 * tq * C + T * C) * x.dtype.itemsize + weight_bytes)
    vmem_limit = int(min(max(4 * vmem_need, 32 * 1024 * 1024), 48 * 1024 * 1024))

    return pl.pallas_call(
        kernel,
        out_shape=jax.ShapeDtypeStruct((B, T, C), x.dtype),
        grid=(B, n_qt),
        in_specs=in_specs,
        out_specs=out_specs,
        compiler_params=pltpu.CompilerParams(
            dimension_semantics=("parallel", "parallel"),
            vmem_limit_bytes=vmem_limit),
        cost_estimate=pl.CostEstimate(
            flops=flops, transcendentals=transcendentals,
            bytes_accessed=bytes_accessed),
    )(*args)


# ---------------- pure-JAX reference (mirrors the PyTorch forward, f32) ----------------
def reference_forward(x, params, *, num_head, head_size):
    (wq, wk, wv, wp, bp, w1, b1, w2, b2, g1, be1, g2, be2) = params
    T = x.shape[1]
    mask = jnp.tril(jnp.ones((T, T), jnp.float32))
    q = x @ wq
    k = x @ wk
    v = x @ wv
    outs = []
    for h in range(num_head):
        sl = slice(h * head_size, (h + 1) * head_size)
        qh, kh, vh = q[..., sl], k[..., sl], v[..., sl]
        wei = jnp.einsum("btd,bsd->bts", qh, kh) * (head_size ** 0.5)
        wei = jnp.where(mask[None] == 0.0, -jnp.inf, wei)
        wei = jax.nn.softmax(wei, axis=-1)
        outs.append(jnp.einsum("bts,bsd->btd", wei, vh))
    attn = jnp.concatenate(outs, axis=-1)
    y = attn @ wp + bp[0]

    def ln(z, g, b, eps=1e-5):
        m = jnp.mean(z, axis=-1, keepdims=True)
        var = jnp.mean((z - m) ** 2, axis=-1, keepdims=True)
        return (z - m) / jnp.sqrt(var + eps) * g[0] + b[0]

    h1 = ln(x + y, g1, be1)
    f = jnp.maximum(h1 @ w1 + b1[0], 0.0) @ w2 + b2[0]
    return ln(h1 + f, g2, be2)


if __name__ == "__main__":
    # small but representative sizes
    B, T, C = 2, 8, 32
    num_head = 4
    head_size = C // num_head
    H = 4 * C

    key = jax.random.PRNGKey(0)
    ks = jax.random.split(key, 16)
    s = 0.02
    x = jax.random.normal(ks[0], (B, T, C), jnp.float32)

    # weights stored so the kernel computes x @ W (i.e. PyTorch W.T), with per-head
    # query/key/value columns concatenated head0..head{n-1}
    wq = jax.random.normal(ks[1], (C, C), jnp.float32) * s
    wk = jax.random.normal(ks[2], (C, C), jnp.float32) * s
    wv = jax.random.normal(ks[3], (C, C), jnp.float32) * s
    wp = jax.random.normal(ks[4], (C, C), jnp.float32) * s
    bp = jax.random.normal(ks[5], (1, C), jnp.float32) * s
    w1 = jax.random.normal(ks[6], (C, H), jnp.float32) * s
    b1 = jax.random.normal(ks[7], (1, H), jnp.float32) * s
    w2 = jax.random.normal(ks[8], (H, C), jnp.float32) * s
    b2 = jax.random.normal(ks[9], (1, C), jnp.float32) * s
    g1 = jnp.ones((1, C), jnp.float32) + jax.random.normal(ks[10], (1, C)) * s
    be1 = jax.random.normal(ks[11], (1, C), jnp.float32) * s
    g2 = jnp.ones((1, C), jnp.float32) + jax.random.normal(ks[12], (1, C)) * s
    be2 = jax.random.normal(ks[13], (1, C), jnp.float32) * s

    params = (wq, wk, wv, wp, bp, w1, b1, w2, b2, g1, be1, g2, be2)

    out = transformer_block(x, params, num_head=num_head, head_size=head_size)
    out = jax.block_until_ready(out)

    # Reference uses the same bf16-rounded matmul weights the kernel sees, in f32 math.
    rt = lambda a: a.astype(jnp.bfloat16).astype(jnp.float32)
    ref_params = (rt(wq), rt(wk), rt(wv), rt(wp), bp,
                  rt(w1), b1, rt(w2), b2, g1, be1, g2, be2)
    ref = reference_forward(x, ref_params, num_head=num_head, head_size=head_size)

    np.testing.assert_allclose(np.asarray(out), np.asarray(ref), rtol=2e-2, atol=2e-2)

    print("KERNEL_OK")
</pallas_src>

<mosaic_0001>
module attributes {stable_mosaic.version = 11 : i64} {
  func.func @transformer_block_kernel(%arg0: i32, %arg1: i32, %arg2: memref<1x8x32xf32, #tpu.memory_space<vmem>>, %arg3: memref<1x8x32xf32, #tpu.memory_space<vmem>>, %arg4: memref<32x32xbf16, #tpu.memory_space<vmem>>, %arg5: memref<32x32xbf16, #tpu.memory_space<vmem>>, %arg6: memref<32x32xbf16, #tpu.memory_space<vmem>>, %arg7: memref<32x32xbf16, #tpu.memory_space<vmem>>, %arg8: memref<1x32xf32, #tpu.memory_space<vmem>>, %arg9: memref<32x128xbf16, #tpu.memory_space<vmem>>, %arg10: memref<1x128xf32, #tpu.memory_space<vmem>>, %arg11: memref<128x32xbf16, #tpu.memory_space<vmem>>, %arg12: memref<1x32xf32, #tpu.memory_space<vmem>>, %arg13: memref<1x32xf32, #tpu.memory_space<vmem>>, %arg14: memref<1x32xf32, #tpu.memory_space<vmem>>, %arg15: memref<1x32xf32, #tpu.memory_space<vmem>>, %arg16: memref<1x32xf32, #tpu.memory_space<vmem>>, %arg17: memref<1x8x32xf32, #tpu.memory_space<vmem>>) attributes {dimension_semantics = [#tpu.dimension_semantics<parallel>, #tpu.dimension_semantics<parallel>], iteration_bounds = array<i64: 2, 1>, scalar_prefetch = 0 : i64, scratch_operands = 0 : i64, tpu.core_type = #tpu.core_type<tc>, window_params = [{transform_indices = @transform_0, window_bounds = array<i64: 1, 8, 32>}, {transform_indices = @transform_1, window_bounds = array<i64: 1, 8, 32>}, {pipeline_mode = #tpu.pipeline_mode<synchronous>, transform_indices = @transform_2, window_bounds = array<i64: 32, 32>}, {pipeline_mode = #tpu.pipeline_mode<synchronous>, transform_indices = @transform_3, window_bounds = array<i64: 32, 32>}, {pipeline_mode = #tpu.pipeline_mode<synchronous>, transform_indices = @transform_4, window_bounds = array<i64: 32, 32>}, {pipeline_mode = #tpu.pipeline_mode<synchronous>, transform_indices = @transform_5, window_bounds = array<i64: 32, 32>}, {pipeline_mode = #tpu.pipeline_mode<synchronous>, transform_indices = @transform_6, window_bounds = array<i64: 1, 32>}, {pipeline_mode = #tpu.pipeline_mode<synchronous>, transform_indices = @transform_7, window_bounds = array<i64: 32, 128>}, {pipeline_mode = #tpu.pipeline_mode<synchronous>, transform_indices = @transform_8, window_bounds = array<i64: 1, 128>}, {pipeline_mode = #tpu.pipeline_mode<synchronous>, transform_indices = @transform_9, window_bounds = array<i64: 128, 32>}, {pipeline_mode = #tpu.pipeline_mode<synchronous>, transform_indices = @transform_10, window_bounds = array<i64: 1, 32>}, {pipeline_mode = #tpu.pipeline_mode<synchronous>, transform_indices = @transform_11, window_bounds = array<i64: 1, 32>}, {pipeline_mode = #tpu.pipeline_mode<synchronous>, transform_indices = @transform_12, window_bounds = array<i64: 1, 32>}, {pipeline_mode = #tpu.pipeline_mode<synchronous>, transform_indices = @transform_13, window_bounds = array<i64: 1, 32>}, {pipeline_mode = #tpu.pipeline_mode<synchronous>, transform_indices = @transform_14, window_bounds = array<i64: 1, 32>}, {transform_indices = @transform_15, window_bounds = array<i64: 1, 8, 32>}]} {
    %c0 = arith.constant 0 : index
    %c0_0 = arith.constant 0 : index
    %c0_1 = arith.constant 0 : index
    %0 = vector.load %arg2[%c0, %c0_0, %c0_1] : memref<1x8x32xf32, #tpu.memory_space<vmem>>, vector<1x8x32xf32>
    %1 = vector.shape_cast %0 : vector<1x8x32xf32> to vector<8x32xf32>
    %2 = arith.truncf %1 : vector<8x32xf32> to vector<8x32xbf16>
    %c0_2 = arith.constant 0 : index
    %c0_3 = arith.constant 0 : index
    %c0_4 = arith.constant 0 : index
    %3 = vector.load %arg3[%c0_2, %c0_3, %c0_4] : memref<1x8x32xf32, #tpu.memory_space<vmem>>, vector<1x8x32xf32>
    %4 = vector.shape_cast %3 : vector<1x8x32xf32> to vector<8x32xf32>
    %5 = arith.truncf %4 : vector<8x32xf32> to vector<8x32xbf16>
    %c0_5 = arith.constant 0 : index
    %c0_6 = arith.constant 0 : index
    %6 = vector.load %arg4[%c0_5, %c0_6] : memref<32x32xbf16, #tpu.memory_space<vmem>>, vector<32x32xbf16>
    %cst = arith.constant dense<0.000000e+00> : vector<8x32xf32>
    %7 = tpu.matmul %2, %6, %cst {dimension_numbers = #tpu.dot_dimension_numbers<[1], [0], [0], [1], [0, 0, 1, 1], [], []>} : vector<8x32xbf16>, vector<32x32xbf16>, vector<8x32xf32> -> vector<8x32xf32>
    %c0_7 = arith.constant 0 : index
    %c0_8 = arith.constant 0 : index
    %8 = vector.load %arg5[%c0_7, %c0_8] : memref<32x32xbf16, #tpu.memory_space<vmem>>, vector<32x32xbf16>
    %cst_9 = arith.constant dense<0.000000e+00> : vector<8x32xf32>
    %9 = tpu.matmul %5, %8, %cst_9 {dimension_numbers = #tpu.dot_dimension_numbers<[1], [0], [0], [1], [0, 0, 1, 1], [], []>} : vector<8x32xbf16>, vector<32x32xbf16>, vector<8x32xf32> -> vector<8x32xf32>
    %c0_10 = arith.constant 0 : index
    %c0_11 = arith.constant 0 : index
    %10 = vector.load %arg6[%c0_10, %c0_11] : memref<32x32xbf16, #tpu.memory_space<vmem>>, vector<32x32xbf16>
    %cst_12 = arith.constant dense<0.000000e+00> : vector<8x32xf32>
    %11 = tpu.matmul %5, %10, %cst_12 {dimension_numbers = #tpu.dot_dimension_numbers<[1], [0], [0], [1], [0, 0, 1, 1], [], []>} : vector<8x32xbf16>, vector<32x32xbf16>, vector<8x32xf32> -> vector<8x32xf32>
    %12 = arith.truncf %7 : vector<8x32xf32> to vector<8x32xbf16>
    %13 = arith.truncf %9 : vector<8x32xf32> to vector<8x32xbf16>
    %14 = arith.truncf %11 : vector<8x32xf32> to vector<8x32xbf16>
    %c0_13 = arith.constant 0 : index
    %c0_14 = arith.constant 0 : index
    %15 = vector.load %arg7[%c0_13, %c0_14] : memref<32x32xbf16, #tpu.memory_space<vmem>>, vector<32x32xbf16>
    %c8_i32 = arith.constant 8 : i32
    %16 = arith.muli %arg1, %c8_i32 : i32
    %17 = tpu.iota {dimensions = array<i32: 0>} : vector<8x8xi32>
    %18 = vector.broadcast %16 : i32 to vector<8x8xi32>
    %19 = arith.addi %18, %17 : vector<8x8xi32>
    %20 = tpu.iota {dimensions = array<i32: 1>} : vector<8x8xi32>
    %21 = arith.cmpi sle, %20, %19 : vector<8x8xi32>
    %cst_15 = arith.constant 0.000000e+00 : f32
    %cst_16 = arith.constant -1.000000e+30 : f32
    %22 = vector.broadcast %cst_15 : f32 to vector<8x8xf32>
    %23 = vector.broadcast %cst_16 : f32 to vector<8x8xf32>
    %24 = arith.select %21, %22, %23 : vector<8x8xi1>, vector<8x8xf32>
    %cst_17 = arith.constant 0.000000e+00 : f32
    %25 = vector.broadcast %cst_17 : f32 to vector<8x32xf32>
    %26 = vector.extract_strided_slice %12 {offsets = [0, 0], sizes = [8, 8], strides = [1, 1]} : vector<8x32xbf16> to vector<8x8xbf16>
    %27 = vector.extract_strided_slice %13 {offsets = [0, 0], sizes = [8, 8], strides = [1, 1]} : vector<8x32xbf16> to vector<8x8xbf16>
    %28 = vector.extract_strided_slice %14 {offsets = [0, 0], sizes = [8, 8], strides = [1, 1]} : vector<8x32xbf16> to vector<8x8xbf16>
    %cst_18 = arith.constant dense<0.000000e+00> : vector<8x8xf32>
    %29 = tpu.matmul %26, %27, %cst_18 {dimension_numbers = #tpu.dot_dimension_numbers<[1], [1], [0], [0], [0, 0, 1, 0], [], []>} : vector<8x8xbf16>, vector<8x8xbf16>, vector<8x8xf32> -> vector<8x8xf32>
    %cst_19 = arith.constant 2.82842708 : f32
    %30 = vector.broadcast %cst_19 : f32 to vector<8x8xf32>
    %31 = arith.mulf %29, %30 : vector<8x8xf32>
    %32 = arith.addf %31, %24 : vector<8x8xf32>
    %cst_20 = arith.constant dense<0xFF800000> : vector<8xf32>
    %33 = vector.multi_reduction <maximumf>, %32, %cst_20 [1] : vector<8x8xf32> to vector<8xf32>
    %34 = vector.shape_cast %33 : vector<8xf32> to vector<8x1xf32>
    %35 = vector.broadcast %34 : vector<8x1xf32> to vector<8x8xf32>
    %36 = arith.subf %32, %35 : vector<8x8xf32>
    %37 = math.exp %36 : vector<8x8xf32>
    %cst_21 = arith.constant dense<0.000000e+00> : vector<8xf32>
    %38 = vector.multi_reduction <add>, %37, %cst_21 [1] : vector<8x8xf32> to vector<8xf32>
    %39 = vector.shape_cast %38 : vector<8xf32> to vector<8x1xf32>
    %40 = tpu.reciprocal %39 {approx = true} : vector<8x1xf32> -> vector<8x1xf32>
    %41 = vector.broadcast %40 : vector<8x1xf32> to vector<8x8xf32>
    %42 = arith.mulf %37, %41 : vector<8x8xf32>
    %43 = arith.truncf %42 : vector<8x8xf32> to vector<8x8xbf16>
    %cst_22 = arith.constant dense<0.000000e+00> : vector<8x8xf32>
    %44 = tpu.matmul %43, %28, %cst_22 {dimension_numbers = #tpu.dot_dimension_numbers<[1], [0], [0], [1], [0, 0, 1, 1], [], []>} : vector<8x8xbf16>, vector<8x8xbf16>, vector<8x8xf32> -> vector<8x8xf32>
    %45 = arith.truncf %44 : vector<8x8xf32> to vector<8x8xbf16>
    %46 = vector.extract_strided_slice %15 {offsets = [0, 0], sizes = [8, 32], strides = [1, 1]} : vector<32x32xbf16> to vector<8x32xbf16>
    %cst_23 = arith.constant dense<0.000000e+00> : vector<8x32xf32>
    %47 = tpu.matmul %45, %46, %cst_23 {dimension_numbers = #tpu.dot_dimension_numbers<[1], [0], [0], [1], [0, 0, 1, 1], [], []>} : vector<8x8xbf16>, vector<8x32xbf16>, vector<8x32xf32> -> vector<8x32xf32>
    %48 = arith.addf %25, %47 : vector<8x32xf32>
    %49 = vector.extract_strided_slice %12 {offsets = [0, 8], sizes = [8, 8], strides = [1, 1]} : vector<8x32xbf16> to vector<8x8xbf16>
    %50 = vector.extract_strided_slice %13 {offsets = [0, 8], sizes = [8, 8], strides = [1, 1]} : vector<8x32xbf16> to vector<8x8xbf16>
    %51 = vector.extract_strided_slice %14 {offsets = [0, 8], sizes = [8, 8], strides = [1, 1]} : vector<8x32xbf16> to vector<8x8xbf16>
    %cst_24 = arith.constant dense<0.000000e+00> : vector<8x8xf32>
    %52 = tpu.matmul %49, %50, %cst_24 {dimension_numbers = #tpu.dot_dimension_numbers<[1], [1], [0], [0], [0, 0, 1, 0], [], []>} : vector<8x8xbf16>, vector<8x8xbf16>, vector<8x8xf32> -> vector<8x8xf32>
    %cst_25 = arith.constant 2.82842708 : f32
    %53 = vector.broadcast %cst_25 : f32 to vector<8x8xf32>
    %54 = arith.mulf %52, %53 : vector<8x8xf32>
    %55 = arith.addf %54, %24 : vector<8x8xf32>
    %cst_26 = arith.constant dense<0xFF800000> : vector<8xf32>
    %56 = vector.multi_reduction <maximumf>, %55, %cst_26 [1] : vector<8x8xf32> to vector<8xf32>
    %57 = vector.shape_cast %56 : vector<8xf32> to vector<8x1xf32>
    %58 = vector.broadcast %57 : vector<8x1xf32> to vector<8x8xf32>
    %59 = arith.subf %55, %58 : vector<8x8xf32>
    %60 = math.exp %59 : vector<8x8xf32>
    %cst_27 = arith.constant dense<0.000000e+00> : vector<8xf32>
    %61 = vector.multi_reduction <add>, %60, %cst_27 [1] : vector<8x8xf32> to vector<8xf32>
    %62 = vector.shape_cast %61 : vector<8xf32> to vector<8x1xf32>
    %63 = tpu.reciprocal %62 {approx = true} : vector<8x1xf32> -> vector<8x1xf32>
    %64 = vector.broadcast %63 : vector<8x1xf32> to vector<8x8xf32>
    %65 = arith.mulf %60, %64 : vector<8x8xf32>
    %66 = arith.truncf %65 : vector<8x8xf32> to vector<8x8xbf16>
    %cst_28 = arith.constant dense<0.000000e+00> : vector<8x8xf32>
    %67 = tpu.matmul %66, %51, %cst_28 {dimension_numbers = #tpu.dot_dimension_numbers<[1], [0], [0], [1], [0, 0, 1, 1], [], []>} : vector<8x8xbf16>, vector<8x8xbf16>, vector<8x8xf32> -> vector<8x8xf32>
    %68 = arith.truncf %67 : vector<8x8xf32> to vector<8x8xbf16>
    %69 = vector.extract_strided_slice %15 {offsets = [8, 0], sizes = [8, 32], strides = [1, 1]} : vector<32x32xbf16> to vector<8x32xbf16>
    %cst_29 = arith.constant dense<0.000000e+00> : vector<8x32xf32>
    %70 = tpu.matmul %68, %69, %cst_29 {dimension_numbers = #tpu.dot_dimension_numbers<[1], [0], [0], [1], [0, 0, 1, 1], [], []>} : vector<8x8xbf16>, vector<8x32xbf16>, vector<8x32xf32> -> vector<8x32xf32>
    %71 = arith.addf %48, %70 : vector<8x32xf32>
    %72 = vector.extract_strided_slice %12 {offsets = [0, 16], sizes = [8, 8], strides = [1, 1]} : vector<8x32xbf16> to vector<8x8xbf16>
    %73 = vector.extract_strided_slice %13 {offsets = [0, 16], sizes = [8, 8], strides = [1, 1]} : vector<8x32xbf16> to vector<8x8xbf16>
    %74 = vector.extract_strided_slice %14 {offsets = [0, 16], sizes = [8, 8], strides = [1, 1]} : vector<8x32xbf16> to vector<8x8xbf16>
    %cst_30 = arith.constant dense<0.000000e+00> : vector<8x8xf32>
    %75 = tpu.matmul %72, %73, %cst_30 {dimension_numbers = #tpu.dot_dimension_numbers<[1], [1], [0], [0], [0, 0, 1, 0], [], []>} : vector<8x8xbf16>, vector<8x8xbf16>, vector<8x8xf32> -> vector<8x8xf32>
    %cst_31 = arith.constant 2.82842708 : f32
    %76 = vector.broadcast %cst_31 : f32 to vector<8x8xf32>
    %77 = arith.mulf %75, %76 : vector<8x8xf32>
    %78 = arith.addf %77, %24 : vector<8x8xf32>
    %cst_32 = arith.constant dense<0xFF800000> : vector<8xf32>
    %79 = vector.multi_reduction <maximumf>, %78, %cst_32 [1] : vector<8x8xf32> to vector<8xf32>
    %80 = vector.shape_cast %79 : vector<8xf32> to vector<8x1xf32>
    %81 = vector.broadcast %80 : vector<8x1xf32> to vector<8x8xf32>
    %82 = arith.subf %78, %81 : vector<8x8xf32>
    %83 = math.exp %82 : vector<8x8xf32>
    %cst_33 = arith.constant dense<0.000000e+00> : vector<8xf32>
    %84 = vector.multi_reduction <add>, %83, %cst_33 [1] : vector<8x8xf32> to vector<8xf32>
    %85 = vector.shape_cast %84 : vector<8xf32> to vector<8x1xf32>
    %86 = tpu.reciprocal %85 {approx = true} : vector<8x1xf32> -> vector<8x1xf32>
    %87 = vector.broadcast %86 : vector<8x1xf32> to vector<8x8xf32>
    %88 = arith.mulf %83, %87 : vector<8x8xf32>
    %89 = arith.truncf %88 : vector<8x8xf32> to vector<8x8xbf16>
    %cst_34 = arith.constant dense<0.000000e+00> : vector<8x8xf32>
    %90 = tpu.matmul %89, %74, %cst_34 {dimension_numbers = #tpu.dot_dimension_numbers<[1], [0], [0], [1], [0, 0, 1, 1], [], []>} : vector<8x8xbf16>, vector<8x8xbf16>, vector<8x8xf32> -> vector<8x8xf32>
    %91 = arith.truncf %90 : vector<8x8xf32> to vector<8x8xbf16>
    %92 = vector.extract_strided_slice %15 {offsets = [16, 0], sizes = [8, 32], strides = [1, 1]} : vector<32x32xbf16> to vector<8x32xbf16>
    %cst_35 = arith.constant dense<0.000000e+00> : vector<8x32xf32>
    %93 = tpu.matmul %91, %92, %cst_35 {dimension_numbers = #tpu.dot_dimension_numbers<[1], [0], [0], [1], [0, 0, 1, 1], [], []>} : vector<8x8xbf16>, vector<8x32xbf16>, vector<8x32xf32> -> vector<8x32xf32>
    %94 = arith.addf %71, %93 : vector<8x32xf32>
    %95 = vector.extract_strided_slice %12 {offsets = [0, 24], sizes = [8, 8], strides = [1, 1]} : vector<8x32xbf16> to vector<8x8xbf16>
    %96 = vector.extract_strided_slice %13 {offsets = [0, 24], sizes = [8, 8], strides = [1, 1]} : vector<8x32xbf16> to vector<8x8xbf16>
    %97 = vector.extract_strided_slice %14 {offsets = [0, 24], sizes = [8, 8], strides = [1, 1]} : vector<8x32xbf16> to vector<8x8xbf16>
    %cst_36 = arith.constant dense<0.000000e+00> : vector<8x8xf32>
    %98 = tpu.matmul %95, %96, %cst_36 {dimension_numbers = #tpu.dot_dimension_numbers<[1], [1], [0], [0], [0, 0, 1, 0], [], []>} : vector<8x8xbf16>, vector<8x8xbf16>, vector<8x8xf32> -> vector<8x8xf32>
    %cst_37 = arith.constant 2.82842708 : f32
    %99 = vector.broadcast %cst_37 : f32 to vector<8x8xf32>
    %100 = arith.mulf %98, %99 : vector<8x8xf32>
    %101 = arith.addf %100, %24 : vector<8x8xf32>
    %cst_38 = arith.constant dense<0xFF800000> : vector<8xf32>
    %102 = vector.multi_reduction <maximumf>, %101, %cst_38 [1] : vector<8x8xf32> to vector<8xf32>
    %103 = vector.shape_cast %102 : vector<8xf32> to vector<8x1xf32>
    %104 = vector.broadcast %103 : vector<8x1xf32> to vector<8x8xf32>
    %105 = arith.subf %101, %104 : vector<8x8xf32>
    %106 = math.exp %105 : vector<8x8xf32>
    %cst_39 = arith.constant dense<0.000000e+00> : vector<8xf32>
    %107 = vector.multi_reduction <add>, %106, %cst_39 [1] : vector<8x8xf32> to vector<8xf32>
    %108 = vector.shape_cast %107 : vector<8xf32> to vector<8x1xf32>
    %109 = tpu.reciprocal %108 {approx = true} : vector<8x1xf32> -> vector<8x1xf32>
    %110 = vector.broadcast %109 : vector<8x1xf32> to vector<8x8xf32>
    %111 = arith.mulf %106, %110 : vector<8x8xf32>
    %112 = arith.truncf %111 : vector<8x8xf32> to vector<8x8xbf16>
    %cst_40 = arith.constant dense<0.000000e+00> : vector<8x8xf32>
    %113 = tpu.matmul %112, %97, %cst_40 {dimension_numbers = #tpu.dot_dimension_numbers<[1], [0], [0], [1], [0, 0, 1, 1], [], []>} : vector<8x8xbf16>, vector<8x8xbf16>, vector<8x8xf32> -> vector<8x8xf32>
    %114 = arith.truncf %113 : vector<8x8xf32> to vector<8x8xbf16>
    %115 = vector.extract_strided_slice %15 {offsets = [24, 0], sizes = [8, 32], strides = [1, 1]} : vector<32x32xbf16> to vector<8x32xbf16>
    %cst_41 = arith.constant dense<0.000000e+00> : vector<8x32xf32>
    %116 = tpu.matmul %114, %115, %cst_41 {dimension_numbers = #tpu.dot_dimension_numbers<[1], [0], [0], [1], [0, 0, 1, 1], [], []>} : vector<8x8xbf16>, vector<8x32xbf16>, vector<8x32xf32> -> vector<8x32xf32>
    %117 = arith.addf %94, %116 : vector<8x32xf32>
    %c0_42 = arith.constant 0 : index
    %c0_43 = arith.constant 0 : index
    %118 = vector.load %arg8[%c0_42, %c0_43] : memref<1x32xf32, #tpu.memory_space<vmem>>, vector<1x32xf32>
    %119 = vector.shape_cast %118 : vector<1x32xf32> to vector<32xf32>
    %120 = vector.shape_cast %119 : vector<32xf32> to vector<1x32xf32>
    %121 = vector.broadcast %120 : vector<1x32xf32> to vector<8x32xf32>
    %122 = arith.addf %117, %121 : vector<8x32xf32>
    %123 = arith.addf %1, %122 : vector<8x32xf32>
    %c0_44 = arith.constant 0 : index
    %c0_45 = arith.constant 0 : index
    %124 = vector.load %arg13[%c0_44, %c0_45] : memref<1x32xf32, #tpu.memory_space<vmem>>, vector<1x32xf32>
    %125 = vector.shape_cast %124 : vector<1x32xf32> to vector<32xf32>
    %c0_46 = arith.constant 0 : index
    %c0_47 = arith.constant 0 : index
    %126 = vector.load %arg14[%c0_46, %c0_47] : memref<1x32xf32, #tpu.memory_space<vmem>>, vector<1x32xf32>
    %127 = vector.shape_cast %126 : vector<1x32xf32> to vector<32xf32>
    %cst_48 = arith.constant dense<0.000000e+00> : vector<8xf32>
    %128 = vector.multi_reduction <add>, %123, %cst_48 [1] : vector<8x32xf32> to vector<8xf32>
    %129 = vector.shape_cast %128 : vector<8xf32> to vector<8x1xf32>
    %cst_49 = arith.constant 3.200000e+01 : f32
    %130 = vector.broadcast %cst_49 : f32 to vector<8x1xf32>
    %131 = arith.divf %129, %130 : vector<8x1xf32>
    %132 = vector.broadcast %131 : vector<8x1xf32> to vector<8x32xf32>
    %133 = arith.subf %123, %132 : vector<8x32xf32>
    %134 = arith.mulf %133, %133 : vector<8x32xf32>
    %cst_50 = arith.constant dense<0.000000e+00> : vector<8xf32>
    %135 = vector.multi_reduction <add>, %134, %cst_50 [1] : vector<8x32xf32> to vector<8xf32>
    %136 = vector.shape_cast %135 : vector<8xf32> to vector<8x1xf32>
    %cst_51 = arith.constant 3.200000e+01 : f32
    %137 = vector.broadcast %cst_51 : f32 to vector<8x1xf32>
    %138 = arith.divf %136, %137 : vector<8x1xf32>
    %139 = vector.broadcast %131 : vector<8x1xf32> to vector<8x32xf32>
    %140 = arith.subf %123, %139 : vector<8x32xf32>
    %cst_52 = arith.constant 9.99999974E-6 : f32
    %141 = vector.broadcast %cst_52 : f32 to vector<8x1xf32>
    %142 = arith.addf %138, %141 : vector<8x1xf32>
    %143 = math.rsqrt %142 : vector<8x1xf32>
    %144 = vector.broadcast %143 : vector<8x1xf32> to vector<8x32xf32>
    %145 = arith.mulf %140, %144 : vector<8x32xf32>
    %146 = vector.shape_cast %125 : vector<32xf32> to vector<1x32xf32>
    %147 = vector.broadcast %146 : vector<1x32xf32> to vector<8x32xf32>
    %148 = arith.mulf %145, %147 : vector<8x32xf32>
    %149 = vector.shape_cast %127 : vector<32xf32> to vector<1x32xf32>
    %150 = vector.broadcast %149 : vector<1x32xf32> to vector<8x32xf32>
    %151 = arith.addf %148, %150 : vector<8x32xf32>
    %152 = arith.truncf %151 : vector<8x32xf32> to vector<8x32xbf16>
    %cst_53 = arith.constant 0.000000e+00 : f32
    %153 = vector.broadcast %cst_53 : f32 to vector<8x32xf32>
    %c0_54 = arith.constant 0 : index
    %c0_55 = arith.constant 0 : index
    %154 = vector.load %arg9[%c0_54, %c0_55] : memref<32x128xbf16, #tpu.memory_space<vmem>>, vector<32x128xbf16>
    %cst_56 = arith.constant dense<0.000000e+00> : vector<8x128xf32>
    %155 = tpu.matmul %152, %154, %cst_56 {dimension_numbers = #tpu.dot_dimension_numbers<[1], [0], [0], [1], [0, 0, 1, 1], [], []>} : vector<8x32xbf16>, vector<32x128xbf16>, vector<8x128xf32> -> vector<8x128xf32>
    %c0_57 = arith.constant 0 : index
    %c0_58 = arith.constant 0 : index
    %156 = vector.load %arg10[%c0_57, %c0_58] : memref<1x128xf32, #tpu.memory_space<vmem>>, vector<1x128xf32>
    %157 = vector.shape_cast %156 : vector<1x128xf32> to vector<128xf32>
    %158 = vector.shape_cast %157 : vector<128xf32> to vector<1x128xf32>
    %159 = vector.broadcast %158 : vector<1x128xf32> to vector<8x128xf32>
    %160 = arith.addf %155, %159 : vector<8x128xf32>
    %cst_59 = arith.constant 0.000000e+00 : f32
    %161 = vector.broadcast %cst_59 : f32 to vector<8x128xf32>
    %162 = arith.maximumf %160, %161 : vector<8x128xf32>
    %163 = arith.truncf %162 : vector<8x128xf32> to vector<8x128xbf16>
    %c0_60 = arith.constant 0 : index
    %c0_61 = arith.constant 0 : index
    %164 = vector.load %arg11[%c0_60, %c0_61] : memref<128x32xbf16, #tpu.memory_space<vmem>>, vector<128x32xbf16>
    %cst_62 = arith.constant dense<0.000000e+00> : vector<8x32xf32>
    %165 = tpu.matmul %163, %164, %cst_62 {dimension_numbers = #tpu.dot_dimension_numbers<[1], [0], [0], [1], [0, 0, 1, 1], [], []>} : vector<8x128xbf16>, vector<128x32xbf16>, vector<8x32xf32> -> vector<8x32xf32>
    %166 = arith.addf %153, %165 : vector<8x32xf32>
    %c0_63 = arith.constant 0 : index
    %c0_64 = arith.constant 0 : index
    %167 = vector.load %arg12[%c0_63, %c0_64] : memref<1x32xf32, #tpu.memory_space<vmem>>, vector<1x32xf32>
    %168 = vector.shape_cast %167 : vector<1x32xf32> to vector<32xf32>
    %169 = vector.shape_cast %168 : vector<32xf32> to vector<1x32xf32>
    %170 = vector.broadcast %169 : vector<1x32xf32> to vector<8x32xf32>
    %171 = arith.addf %166, %170 : vector<8x32xf32>
    %172 = arith.addf %151, %171 : vector<8x32xf32>
    %c0_65 = arith.constant 0 : index
    %c0_66 = arith.constant 0 : index
    %173 = vector.load %arg15[%c0_65, %c0_66] : memref<1x32xf32, #tpu.memory_space<vmem>>, vector<1x32xf32>
    %174 = vector.shape_cast %173 : vector<1x32xf32> to vector<32xf32>
    %c0_67 = arith.constant 0 : index
    %c0_68 = arith.constant 0 : index
    %175 = vector.load %arg16[%c0_67, %c0_68] : memref<1x32xf32, #tpu.memory_space<vmem>>, vector<1x32xf32>
    %176 = vector.shape_cast %175 : vector<1x32xf32> to vector<32xf32>
    %cst_69 = arith.constant dense<0.000000e+00> : vector<8xf32>
    %177 = vector.multi_reduction <add>, %172, %cst_69 [1] : vector<8x32xf32> to vector<8xf32>
    %178 = vector.shape_cast %177 : vector<8xf32> to vector<8x1xf32>
    %cst_70 = arith.constant 3.200000e+01 : f32
    %179 = vector.broadcast %cst_70 : f32 to vector<8x1xf32>
    %180 = arith.divf %178, %179 : vector<8x1xf32>
    %181 = vector.broadcast %180 : vector<8x1xf32> to vector<8x32xf32>
    %182 = arith.subf %172, %181 : vector<8x32xf32>
    %183 = arith.mulf %182, %182 : vector<8x32xf32>
    %cst_71 = arith.constant dense<0.000000e+00> : vector<8xf32>
    %184 = vector.multi_reduction <add>, %183, %cst_71 [1] : vector<8x32xf32> to vector<8xf32>
    %185 = vector.shape_cast %184 : vector<8xf32> to vector<8x1xf32>
    %cst_72 = arith.constant 3.200000e+01 : f32
    %186 = vector.broadcast %cst_72 : f32 to vector<8x1xf32>
    %187 = arith.divf %185, %186 : vector<8x1xf32>
    %188 = vector.broadcast %180 : vector<8x1xf32> to vector<8x32xf32>
    %189 = arith.subf %172, %188 : vector<8x32xf32>
    %cst_73 = arith.constant 9.99999974E-6 : f32
    %190 = vector.broadcast %cst_73 : f32 to vector<8x1xf32>
    %191 = arith.addf %187, %190 : vector<8x1xf32>
    %192 = math.rsqrt %191 : vector<8x1xf32>
    %193 = vector.broadcast %192 : vector<8x1xf32> to vector<8x32xf32>
    %194 = arith.mulf %189, %193 : vector<8x32xf32>
    %195 = vector.shape_cast %174 : vector<32xf32> to vector<1x32xf32>
    %196 = vector.broadcast %195 : vector<1x32xf32> to vector<8x32xf32>
    %197 = arith.mulf %194, %196 : vector<8x32xf32>
    %198 = vector.shape_cast %176 : vector<32xf32> to vector<1x32xf32>
    %199 = vector.broadcast %198 : vector<1x32xf32> to vector<8x32xf32>
    %200 = arith.addf %197, %199 : vector<8x32xf32>
    %c0_74 = arith.constant 0 : index
    %c0_75 = arith.constant 0 : index
    %c0_76 = arith.constant 0 : index
    %201 = vector.load %arg17[%c0_74, %c0_75, %c0_76] : memref<1x8x32xf32, #tpu.memory_space<vmem>>, vector<1x8x32xf32>
    %202 = vector.shape_cast %201 : vector<1x8x32xf32> to vector<8x32xf32>
    %203 = vector.shape_cast %200 : vector<8x32xf32> to vector<1x8x32xf32>
    tpu.vector_store %arg17[%c0_74, %c0_75, %c0_76], %203 {strides = array<i32>} : memref<1x8x32xf32, #tpu.memory_space<vmem>>, vector<1x8x32xf32>,
    return
  }
  func.func @transform_0(%arg0: i32, %arg1: i32) -> (i32, i32, i32) {
    %c0_i32 = arith.constant 0 : i32
    %c0_i32_0 = arith.constant 0 : i32
    return %arg0, %arg1, %c0_i32 : i32, i32, i32
  }
  func.func @transform_1(%arg0: i32, %arg1: i32) -> (i32, i32, i32) {
    %c0_i32 = arith.constant 0 : i32
    %c0_i32_0 = arith.constant 0 : i32
    %c0_i32_1 = arith.constant 0 : i32
    return %arg0, %c0_i32, %c0_i32_0 : i32, i32, i32
  }
  func.func @transform_2(%arg0: i32, %arg1: i32) -> (i32, i32) {
    %c0_i32 = arith.constant 0 : i32
    %c0_i32_0 = arith.constant 0 : i32
    %c0_i32_1 = arith.constant 0 : i32
    return %c0_i32, %c0_i32_0 : i32, i32
  }
  func.func @transform_3(%arg0: i32, %arg1: i32) -> (i32, i32) {
    %c0_i32 = arith.constant 0 : i32
    %c0_i32_0 = arith.constant 0 : i32
    %c0_i32_1 = arith.constant 0 : i32
    return %c0_i32, %c0_i32_0 : i32, i32
  }
  func.func @transform_4(%arg0: i32, %arg1: i32) -> (i32, i32) {
    %c0_i32 = arith.constant 0 : i32
    %c0_i32_0 = arith.constant 0 : i32
    %c0_i32_1 = arith.constant 0 : i32
    return %c0_i32, %c0_i32_0 : i32, i32
  }
  func.func @transform_5(%arg0: i32, %arg1: i32) -> (i32, i32) {
    %c0_i32 = arith.constant 0 : i32
    %c0_i32_0 = arith.constant 0 : i32
    %c0_i32_1 = arith.constant 0 : i32
    return %c0_i32, %c0_i32_0 : i32, i32
  }
  func.func @transform_6(%arg0: i32, %arg1: i32) -> (i32, i32) {
    %c0_i32 = arith.constant 0 : i32
    %c0_i32_0 = arith.constant 0 : i32
    %c0_i32_1 = arith.constant 0 : i32
    return %c0_i32, %c0_i32_0 : i32, i32
  }
  func.func @transform_7(%arg0: i32, %arg1: i32) -> (i32, i32) {
    %c0_i32 = arith.constant 0 : i32
    %c0_i32_0 = arith.constant 0 : i32
    %c0_i32_1 = arith.constant 0 : i32
    return %c0_i32, %c0_i32_0 : i32, i32
  }
  func.func @transform_8(%arg0: i32, %arg1: i32) -> (i32, i32) {
    %c0_i32 = arith.constant 0 : i32
    %c0_i32_0 = arith.constant 0 : i32
    %c0_i32_1 = arith.constant 0 : i32
    return %c0_i32, %c0_i32_0 : i32, i32
  }
  func.func @transform_9(%arg0: i32, %arg1: i32) -> (i32, i32) {
    %c0_i32 = arith.constant 0 : i32
    %c0_i32_0 = arith.constant 0 : i32
    %c0_i32_1 = arith.constant 0 : i32
    return %c0_i32, %c0_i32_0 : i32, i32
  }
  func.func @transform_10(%arg0: i32, %arg1: i32) -> (i32, i32) {
    %c0_i32 = arith.constant 0 : i32
    %c0_i32_0 = arith.constant 0 : i32
    %c0_i32_1 = arith.constant 0 : i32
    return %c0_i32, %c0_i32_0 : i32, i32
  }
  func.func @transform_11(%arg0: i32, %arg1: i32) -> (i32, i32) {
    %c0_i32 = arith.constant 0 : i32
    %c0_i32_0 = arith.constant 0 : i32
    %c0_i32_1 = arith.constant 0 : i32
    return %c0_i32, %c0_i32_0 : i32, i32
  }
  func.func @transform_12(%arg0: i32, %arg1: i32) -> (i32, i32) {
    %c0_i32 = arith.constant 0 : i32
    %c0_i32_0 = arith.constant 0 : i32
    %c0_i32_1 = arith.constant 0 : i32
    return %c0_i32, %c0_i32_0 : i32, i32
  }
  func.func @transform_13(%arg0: i32, %arg1: i32) -> (i32, i32) {
    %c0_i32 = arith.constant 0 : i32
    %c0_i32_0 = arith.constant 0 : i32
    %c0_i32_1 = arith.constant 0 : i32
    return %c0_i32, %c0_i32_0 : i32, i32
  }
  func.func @transform_14(%arg0: i32, %arg1: i32) -> (i32, i32) {
    %c0_i32 = arith.constant 0 : i32
    %c0_i32_0 = arith.constant 0 : i32
    %c0_i32_1 = arith.constant 0 : i32
    return %c0_i32, %c0_i32_0 : i32, i32
  }
  func.func @transform_15(%arg0: i32, %arg1: i32) -> (i32, i32, i32) {
    %c0_i32 = arith.constant 0 : i32
    %c0_i32_0 = arith.constant 0 : i32
    return %arg0, %arg1, %c0_i32 : i32, i32, i32
  }
}

</mosaic_0001>

<llo_original>
// kernel: tpu_custom_call.1
$region0: #{tpu_custom_call.1}
  #allocation0 [shape = 'u32[]', space=smem, size = 0x4, offset = 0x4, fixed_abs, tag = 'smem constant byte address 0x4 - core index']
  #allocation1 [shape = 'u32[144,128]{1,0:T(1,128)}', space=vmem, size = 0x12000, scoped, tag = 'internal scratch']
  %s0 = inlined_call_operand.vmem [shape: f32[2,8,32], index: 0, kind: input, shape index: {}]
  %s1 = inlined_call_operand.vmem [shape: f32[2,8,32], index: 1, kind: input, shape index: {}]
  %s2 = inlined_call_operand.vmem [shape: bf16[32,32], index: 2, kind: input, shape index: {}]
  %s3 = inlined_call_operand.vmem [shape: bf16[32,32], index: 3, kind: input, shape index: {}]
  %s4 = inlined_call_operand.vmem [shape: bf16[32,32], index: 4, kind: input, shape index: {}]
  %s5 = inlined_call_operand.hbm [shape: bf16[32,32], index: 5, kind: input, shape index: {}]
  %s6 = inlined_call_operand.vmem [shape: f32[1,32], index: 6, kind: input, shape index: {}]
  %s7 = inlined_call_operand.hbm [shape: bf16[32,128], index: 7, kind: input, shape index: {}]
  %s8 = inlined_call_operand.vmem [shape: f32[1,128], index: 8, kind: input, shape index: {}]
  %s9 = inlined_call_operand.vmem [shape: bf16[128,32], index: 9, kind: input, shape index: {}]
  %s10 = inlined_call_operand.vmem [shape: f32[1,32], index: 10, kind: input, shape index: {}]
  %s11 = inlined_call_operand.vmem [shape: f32[1,32], index: 11, kind: input, shape index: {}]
  %s12 = inlined_call_operand.vmem [shape: f32[1,32], index: 12, kind: input, shape index: {}]
  %s13 = inlined_call_operand.vmem [shape: f32[1,32], index: 13, kind: input, shape index: {}]
  %s14 = inlined_call_operand.vmem [shape: f32[1,32], index: 14, kind: input, shape index: {}]
  %s15 = inlined_call_operand.hbm [shape: f32[2,8,32], index: 15, kind: output, shape index: {}]
  %s16 = sld [smem:[#allocation0]]
  $region101: #{tpu_custom_call.1} parent=0
    _
  %s18 = ssub.s32 1, %s16
  %s19 = scalar_select 0, %s18, %s16
  $region1: #{tpu_custom_call.1} parent=0
    #allocation2 [shape = 'u8[8192]{0}', space=vmem, size = 0x2000, scoped, tag = 'input window, operand 5, single buffered']
    #allocation3 [shape = 's32[2]{0}', space=sflag, size = 0x8, scoped, tag = 'scoped memory for tpu_custom_call.1']
    #allocation4 [shape = 's32[2]{0}', space=sflag, size = 0x8, scoped, tag = 'scoped memory for tpu_custom_call.1']
    #allocation5 [shape = 'u8[8192]{0}', space=vmem, size = 0x2000, scoped, tag = 'input window, operand 7, single buffered']
    #allocation6 [shape = 's32[1]{0}', space=sflag, size = 0x4, scoped, tag = 'scoped memory for tpu_custom_call.1']
    #allocation7 [shape = 'u8[8192]{0}', space=vmem, size = 0x2000, scoped, tag = 'output window, operand 0']
    %20 = vsyncpa [#allocation3], 0
    %21 = vsyncpa [#allocation6], 0
    %22 = vsyncpa [#allocation4], 0
    %s23 = scalar_lea.sflag [#allocation4], 1
    %24 = vsyncpa %s23, 0
    loop: start=0, step=1, limit=4
    $region2: #{tpu_custom_call.1} parent=1 // loop_pre_header
      _
    $region3: #{tpu_custom_call.1} parent=1 // loop_header
      %s26 = sphi 0, %s30
      %p27 = scmp.ge.s32.totalorder %s26, 4
      %s33 = sphi 0, %s45
      %s34 = sphi 0, %s41
      %s35 = sphi 0, %s33
      %s36 = sphi 0, %s34
      %s37 = sphi 0, %s35
      %s38 = sphi 0, %s36
      %s50 = sphi 0, %s52
      %s53 = sphi 0, %s50
      %s54 = sphi 0, %s53
      %s70 = sphi 0, %s54
      %s76 = sphi 0, %s78
      %s79 = sphi 0, %s76
      %s80 = sphi 0, %s79
      %s96 = sphi 0, %s80
      %s100 = sphi 0, %s100
      %s102 = sphi 0, %s100
      %s103 = sphi 0, %s102
      %s117 = sphi 0, %s103
      %s121 = sphi 0, %s121
      %s123 = sphi 0, %s121
      %s124 = sphi 0, %s123
      %s138 = sphi 0, %s124
      %s142 = sphi 0, %s142
      %s144 = sphi 0, %s142
      %s145 = sphi 0, %s144
      %s159 = sphi 0, %s145
      %s163 = sphi 0, %s163
      %s165 = sphi 0, %s163
      %s166 = sphi 0, %s165
      %s180 = sphi 0, %s166
      %s184 = sphi 0, %s184
      %s186 = sphi 0, %s184
      %s187 = sphi 0, %s186
      %s201 = sphi 0, %s187
      %s205 = sphi 0, %s205
      %s207 = sphi 0, %s205
      %s208 = sphi 0, %s207
      %s222 = sphi 0, %s208
      %s226 = sphi 0, %s226
      %s228 = sphi 0, %s226
      %s229 = sphi 0, %s228
      %s243 = sphi 0, %s229
      %s247 = sphi 0, %s247
      %s249 = sphi 0, %s247
      %s250 = sphi 0, %s249
      %s264 = sphi 0, %s250
      %s268 = sphi 0, %s268
      %s270 = sphi 0, %s268
      %s271 = sphi 0, %s270
      %s285 = sphi 0, %s271
      %s289 = sphi 0, %s289
      %s291 = sphi 0, %s289
      %s292 = sphi 0, %s291
      %s306 = sphi 0, %s292
      %s310 = sphi 0, %s310
      %s312 = sphi 0, %s310
      %s313 = sphi 0, %s312
      %s327 = sphi 0, %s313
      %s331 = sphi 0, %s331
      %s333 = sphi 0, %s331
      %s334 = sphi 0, %s333
      %s348 = sphi 0, %s334
      %s352 = sphi 0, %s352
      %s354 = sphi 0, %s352
      %s355 = sphi 0, %s354
      %s369 = sphi 0, %s355
      %s377 = sphi 0, %s379
      %s380 = sphi 0, %s377
      %s381 = sphi 0, %s380
      %s397 = sphi 0, %s381
    $region4: #{tpu_custom_call.1} parent=1 // loop_header_branch
      %29 = sbr.rel (%p27) target = $region8
    $region5: #{tpu_custom_call.1} parent=1 // loop_body
      %s31 = ssub.s32 %s26, 1
      %s32 = ssub.s32 %s26, 2
      %s39 = sadd.s32 1, %s34
      %p40 = scmp.ge.s32.totalorder %s39, 1
      %s41 = scalar_select %p40, 0, %s39
      %s42 = sadd.s32 1, %s33
      %s43 = scalar_select %p40, %s42, %s33
      %p44 = scmp.ge.s32.totalorder %s43, 2
      %s45 = scalar_select %p44, 0, %s43
      %s46 = ssub.s32 %s33, %s45
      %s47 = ssub.s32 %s34, %s41
      %s48 = sor.u32 %s46, %s47
      %p49 = scmp.eq.s32.totalorder %s48, 0
      %s51 = sadd.s32 %s50, 1
      %s52 = scalar_select %p49, %s50, %s51
      %p55 = pneg %p49
      %p56 = scmp.eq.s32.totalorder %s26, 1
      %p57 = por %p55, %p56
      %p58 = scmp.ne.s32.totalorder %s50, %s53
      %p59 = scmp.eq.s32.totalorder %s26, 0
      %p60 = por %p58, %p59
      %p61 = scmp.ne.s32.totalorder %s50, %s53
      %p62 = scmp.eq.s32.totalorder %s31, 1
      %p63 = por %p61, %p62
      %p64 = scmp.ne.s32.totalorder %s53, %s54
      %p65 = scmp.eq.s32.totalorder %s31, 0
      %p66 = por %p64, %p65
      %p67 = scmp.ne.s32.totalorder %s53, %s54
      %p68 = scmp.eq.s32.totalorder %s32, 1
      %p69 = por %p67, %p68
      %p71 = scmp.ne.s32.totalorder %s54, %s70
      %p72 = scmp.eq.s32.totalorder %s32, 0
      %p73 = por %p71, %p72
      %s74 = ssub.s32 %s33, %s45
      %p75 = scmp.eq.s32.totalorder %s74, 0
      %s77 = sadd.s32 %s76, 1
      %s78 = scalar_select %p75, %s76, %s77
      %p81 = pneg %p75
      %p82 = scmp.eq.s32.totalorder %s26, 1
      %p83 = por %p81, %p82
      %p84 = scmp.ne.s32.totalorder %s76, %s79
      %p85 = scmp.eq.s32.totalorder %s26, 0
      %p86 = por %p84, %p85
      %p87 = scmp.ne.s32.totalorder %s76, %s79
      %p88 = scmp.eq.s32.totalorder %s31, 1
      %p89 = por %p87, %p88
      %p90 = scmp.ne.s32.totalorder %s79, %s80
      %p91 = scmp.eq.s32.totalorder %s31, 0
      %p92 = por %p90, %p91
      %p93 = scmp.ne.s32.totalorder %s79, %s80
      %p94 = scmp.eq.s32.totalorder %s32, 1
      %p95 = por %p93, %p94
      %p97 = scmp.ne.s32.totalorder %s80, %s96
      %p98 = scmp.eq.s32.totalorder %s32, 0
      %p99 = por %p97, %p98
      %s101 = sadd.s32 %s100, 1
      %p104 = scmp.eq.s32.totalorder %s26, 1
      %p105 = scmp.ne.s32.totalorder %s100, %s102
      %p106 = scmp.eq.s32.totalorder %s26, 0
      %p107 = por %p105, %p106
      %p108 = scmp.ne.s32.totalorder %s100, %s102
      %p109 = scmp.eq.s32.totalorder %s31, 1
      %p110 = por %p108, %p109
      %p111 = scmp.ne.s32.totalorder %s102, %s103
      %p112 = scmp.eq.s32.totalorder %s31, 0
      %p113 = por %p111, %p112
      %p114 = scmp.ne.s32.totalorder %s102, %s103
      %p115 = scmp.eq.s32.totalorder %s32, 1
      %p116 = por %p114, %p115
      %p118 = scmp.ne.s32.totalorder %s103, %s117
      %p119 = scmp.eq.s32.totalorder %s32, 0
      %p120 = por %p118, %p119
      %s122 = sadd.s32 %s121, 1
      %p125 = scmp.eq.s32.totalorder %s26, 1
      %p126 = scmp.ne.s32.totalorder %s121, %s123
      %p127 = scmp.eq.s32.totalorder %s26, 0
      %p128 = por %p126, %p127
      %p129 = scmp.ne.s32.totalorder %s121, %s123
      %p130 = scmp.eq.s32.totalorder %s31, 1
      %p131 = por %p129, %p130
      %p132 = scmp.ne.s32.totalorder %s123, %s124
      %p133 = scmp.eq.s32.totalorder %s31, 0
      %p134 = por %p132, %p133
      %p135 = scmp.ne.s32.totalorder %s123, %s124
      %p136 = scmp.eq.s32.totalorder %s32, 1
      %p137 = por %p135, %p136
      %p139 = scmp.ne.s32.totalorder %s124, %s138
      %p140 = scmp.eq.s32.totalorder %s32, 0
      %p141 = por %p139, %p140
      %s143 = sadd.s32 %s142, 1
      %p146 = scmp.eq.s32.totalorder %s26, 1
      %p147 = scmp.ne.s32.totalorder %s142, %s144
      %p148 = scmp.eq.s32.totalorder %s26, 0
      %p149 = por %p147, %p148
      %p150 = scmp.ne.s32.totalorder %s142, %s144
      %p151 = scmp.eq.s32.totalorder %s31, 1
      %p152 = por %p150, %p151
      %p153 = scmp.ne.s32.totalorder %s144, %s145
      %p154 = scmp.eq.s32.totalorder %s31, 0
      %p155 = por %p153, %p154
      %p156 = scmp.ne.s32.totalorder %s144, %s145
      %p157 = scmp.eq.s32.totalorder %s32, 1
      %p158 = por %p156, %p157
      %p160 = scmp.ne.s32.totalorder %s145, %s159
      %p161 = scmp.eq.s32.totalorder %s32, 0
      %p162 = por %p160, %p161
      %s164 = sadd.s32 %s163, 1
      %p167 = scmp.eq.s32.totalorder %s26, 1
      %p168 = scmp.ne.s32.totalorder %s163, %s165
      %p169 = scmp.eq.s32.totalorder %s26, 0
      %p170 = por %p168, %p169
      %p171 = scmp.ne.s32.totalorder %s163, %s165
      %p172 = scmp.eq.s32.totalorder %s31, 1
      %p173 = por %p171, %p172
      %p174 = scmp.ne.s32.totalorder %s165, %s166
      %p175 = scmp.eq.s32.totalorder %s31, 0
      %p176 = por %p174, %p175
      %p177 = scmp.ne.s32.totalorder %s165, %s166
      %p178 = scmp.eq.s32.totalorder %s32, 1
      %p179 = por %p177, %p178
      %p181 = scmp.ne.s32.totalorder %s166, %s180
      %p182 = scmp.eq.s32.totalorder %s32, 0
      %p183 = por %p181, %p182
      %s185 = sadd.s32 %s184, 1
      %p188 = scmp.eq.s32.totalorder %s26, 1
      %p189 = scmp.ne.s32.totalorder %s184, %s186
      %p190 = scmp.eq.s32.totalorder %s26, 0
      %p191 = por %p189, %p190
      %p192 = scmp.ne.s32.totalorder %s184, %s186
      %p193 = scmp.eq.s32.totalorder %s31, 1
      %p194 = por %p192, %p193
      %p195 = scmp.ne.s32.totalorder %s186, %s187
      %p196 = scmp.eq.s32.totalorder %s31, 0
      %p197 = por %p195, %p196
      %p198 = scmp.ne.s32.totalorder %s186, %s187
      %p199 = scmp.eq.s32.totalorder %s32, 1
      %p200 = por %p198, %p199
      %p202 = scmp.ne.s32.totalorder %s187, %s201
      %p203 = scmp.eq.s32.totalorder %s32, 0
      %p204 = por %p202, %p203
      %s206 = sadd.s32 %s205, 1
      %p209 = scmp.eq.s32.totalorder %s26, 1
      %p210 = scmp.ne.s32.totalorder %s205, %s207
      %p211 = scmp.eq.s32.totalorder %s26, 0
      %p212 = por %p210, %p211
      %p213 = scmp.ne.s32.totalorder %s205, %s207
      %p214 = scmp.eq.s32.totalorder %s31, 1
      %p215 = por %p213, %p214
      %p216 = scmp.ne.s32.totalorder %s207, %s208
      %p217 = scmp.eq.s32.totalorder %s31, 0
      %p218 = por %p216, %p217
      %p219 = scmp.ne.s32.totalorder %s207, %s208
      %p220 = scmp.eq.s32.totalorder %s32, 1
      %p221 = por %p219, %p220
      %p223 = scmp.ne.s32.totalorder %s208, %s222
      %p224 = scmp.eq.s32.totalorder %s32, 0
      %p225 = por %p223, %p224
      %s227 = sadd.s32 %s226, 1
      %p230 = scmp.eq.s32.totalorder %s26, 1
      %p231 = scmp.ne.s32.totalorder %s226, %s228
      %p232 = scmp.eq.s32.totalorder %s26, 0
      %p233 = por %p231, %p232
      %p234 = scmp.ne.s32.totalorder %s226, %s228
      %p235 = scmp.eq.s32.totalorder %s31, 1
      %p236 = por %p234, %p235
      %p237 = scmp.ne.s32.totalorder %s228, %s229
      %p238 = scmp.eq.s32.totalorder %s31, 0
      %p239 = por %p237, %p238
      %p240 = scmp.ne.s32.totalorder %s228, %s229
      %p241 = scmp.eq.s32.totalorder %s32, 1
      %p242 = por %p240, %p241
      %p244 = scmp.ne.s32.totalorder %s229, %s243
      %p245 = scmp.eq.s32.totalorder %s32, 0
      %p246 = por %p244, %p245
      %s248 = sadd.s32 %s247, 1
      %p251 = scmp.eq.s32.totalorder %s26, 1
      %p252 = scmp.ne.s32.totalorder %s247, %s249
      %p253 = scmp.eq.s32.totalorder %s26, 0
      %p254 = por %p252, %p253
      %p255 = scmp.ne.s32.totalorder %s247, %s249
      %p256 = scmp.eq.s32.totalorder %s31, 1
      %p257 = por %p255, %p256
      %p258 = scmp.ne.s32.totalorder %s249, %s250
      %p259 = scmp.eq.s32.totalorder %s31, 0
      %p260 = por %p258, %p259
      %p261 = scmp.ne.s32.totalorder %s249, %s250
      %p262 = scmp.eq.s32.totalorder %s32, 1
      %p263 = por %p261, %p262
      %p265 = scmp.ne.s32.totalorder %s250, %s264
      %p266 = scmp.eq.s32.totalorder %s32, 0
      %p267 = por %p265, %p266
      %s269 = sadd.s32 %s268, 1
      %p272 = scmp.eq.s32.totalorder %s26, 1
      %p273 = scmp.ne.s32.totalorder %s268, %s270
      %p274 = scmp.eq.s32.totalorder %s26, 0
      %p275 = por %p273, %p274
      %p276 = scmp.ne.s32.totalorder %s268, %s270
      %p277 = scmp.eq.s32.totalorder %s31, 1
      %p278 = por %p276, %p277
      %p279 = scmp.ne.s32.totalorder %s270, %s271
      %p280 = scmp.eq.s32.totalorder %s31, 0
      %p281 = por %p279, %p280
      %p282 = scmp.ne.s32.totalorder %s270, %s271
      %p283 = scmp.eq.s32.totalorder %s32, 1
      %p284 = por %p282, %p283
      %p286 = scmp.ne.s32.totalorder %s271, %s285
      %p287 = scmp.eq.s32.totalorder %s32, 0
      %p288 = por %p286, %p287
      %s290 = sadd.s32 %s289, 1
      %p293 = scmp.eq.s32.totalorder %s26, 1
      %p294 = scmp.ne.s32.totalorder %s289, %s291
      %p295 = scmp.eq.s32.totalorder %s26, 0
      %p296 = por %p294, %p295
      %p297 = scmp.ne.s32.totalorder %s289, %s291
      %p298 = scmp.eq.s32.totalorder %s31, 1
      %p299 = por %p297, %p298
      %p300 = scmp.ne.s32.totalorder %s291, %s292
      %p301 = scmp.eq.s32.totalorder %s31, 0
      %p302 = por %p300, %p301
      %p303 = scmp.ne.s32.totalorder %s291, %s292
      %p304 = scmp.eq.s32.totalorder %s32, 1
      %p305 = por %p303, %p304
      %p307 = scmp.ne.s32.totalorder %s292, %s306
      %p308 = scmp.eq.s32.totalorder %s32, 0
      %p309 = por %p307, %p308
      %s311 = sadd.s32 %s310, 1
      %p314 = scmp.eq.s32.totalorder %s26, 1
      %p315 = scmp.ne.s32.totalorder %s310, %s312
      %p316 = scmp.eq.s32.totalorder %s26, 0
      %p317 = por %p315, %p316
      %p318 = scmp.ne.s32.totalorder %s310, %s312
      %p319 = scmp.eq.s32.totalorder %s31, 1
      %p320 = por %p318, %p319
      %p321 = scmp.ne.s32.totalorder %s312, %s313
      %p322 = scmp.eq.s32.totalorder %s31, 0
      %p323 = por %p321, %p322
      %p324 = scmp.ne.s32.totalorder %s312, %s313
      %p325 = scmp.eq.s32.totalorder %s32, 1
      %p326 = por %p324, %p325
      %p328 = scmp.ne.s32.totalorder %s313, %s327
      %p329 = scmp.eq.s32.totalorder %s32, 0
      %p330 = por %p328, %p329
      %s332 = sadd.s32 %s331, 1
      %p335 = scmp.eq.s32.totalorder %s26, 1
      %p336 = scmp.ne.s32.totalorder %s331, %s333
      %p337 = scmp.eq.s32.totalorder %s26, 0
      %p338 = por %p336, %p337
      %p339 = scmp.ne.s32.totalorder %s331, %s333
      %p340 = scmp.eq.s32.totalorder %s31, 1
      %p341 = por %p339, %p340
      %p342 = scmp.ne.s32.totalorder %s333, %s334
      %p343 = scmp.eq.s32.totalorder %s31, 0
      %p344 = por %p342, %p343
      %p345 = scmp.ne.s32.totalorder %s333, %s334
      %p346 = scmp.eq.s32.totalorder %s32, 1
      %p347 = por %p345, %p346
      %p349 = scmp.ne.s32.totalorder %s334, %s348
      %p350 = scmp.eq.s32.totalorder %s32, 0
      %p351 = por %p349, %p350
      %s353 = sadd.s32 %s352, 1
      %p356 = scmp.eq.s32.totalorder %s26, 1
      %p357 = scmp.ne.s32.totalorder %s352, %s354
      %p358 = scmp.eq.s32.totalorder %s26, 0
      %p359 = por %p357, %p358
      %p360 = scmp.ne.s32.totalorder %s352, %s354
      %p361 = scmp.eq.s32.totalorder %s31, 1
      %p362 = por %p360, %p361
      %p363 = scmp.ne.s32.totalorder %s354, %s355
      %p364 = scmp.eq.s32.totalorder %s31, 0
      %p365 = por %p363, %p364
      %p366 = scmp.ne.s32.totalorder %s354, %s355
      %p367 = scmp.eq.s32.totalorder %s32, 1
      %p368 = por %p366, %p367
      %p370 = scmp.ne.s32.totalorder %s355, %s369
      %p371 = scmp.eq.s32.totalorder %s32, 0
      %p372 = por %p370, %p371
      %s373 = ssub.s32 %s33, %s45
      %s374 = ssub.s32 %s34, %s41
      %s375 = sor.u32 %s373, %s374
      %p376 = scmp.eq.s32.totalorder %s375, 0
      %s378 = sadd.s32 %s377, 1
      %s379 = scalar_select %p376, %s377, %s378
      %p382 = pneg %p376
      %p383 = scmp.eq.s32.totalorder %s26, 1
      %p384 = por %p382, %p383
      %p385 = scmp.ne.s32.totalorder %s377, %s380
      %p386 = scmp.eq.s32.totalorder %s26, 0
      %p387 = por %p385, %p386
      %p388 = scmp.ne.s32.totalorder %s377, %s380
      %p389 = scmp.eq.s32.totalorder %s31, 1
      %p390 = por %p388, %p389
      %p391 = scmp.ne.s32.totalorder %s380, %s381
      %p392 = scmp.eq.s32.totalorder %s31, 0
      %p393 = por %p391, %p392
      %p394 = scmp.ne.s32.totalorder %s380, %s381
      %p395 = scmp.eq.s32.totalorder %s32, 1
      %p396 = por %p394, %p395
      %p398 = scmp.ne.s32.totalorder %s381, %s397
      %p399 = scmp.eq.s32.totalorder %s32, 0
      %p400 = por %p398, %p399
      %p401 = scmp.le.s32.totalorder 1, %s26
      %p402 = scmp.lt.s32.totalorder %s26, 3
      %p403 = pnand %p401, %p402
      %p404 = pneg %p403
      // Predicated region
      $region9: #{tpu_custom_call.1} parent=5 // pred_check
        _
      $region10: #{tpu_custom_call.1} parent=5 // pred_check_branch
        %406 = sbr.rel (%p403) target = $region12
      $region11: #{tpu_custom_call.1} parent=5 // pred_region
        %s407 = ssub.s32 %s26, 1
        // Predicated region
        $region13: #{tpu_custom_call.1} parent=11 // pred_check
          %p408 = pneg %p113
        $region14: #{tpu_custom_call.1} parent=11 // pred_check_branch
          %410 = sbr.rel (%p408) target = $region16
        $region15: #{tpu_custom_call.1} parent=11 // pred_region
          _
        $region16: #{tpu_custom_call.1} parent=11 // pred_fallthru
          _
        // Predicated region
        $region17: #{tpu_custom_call.1} parent=11 // pred_check
          %p411 = pneg %p134
        $region18: #{tpu_custom_call.1} parent=11 // pred_check_branch
          %413 = sbr.rel (%p411) target = $region20
        $region19: #{tpu_custom_call.1} parent=11 // pred_region
          _
        $region20: #{tpu_custom_call.1} parent=11 // pred_fallthru
          _
        // Predicated region
        $region21: #{tpu_custom_call.1} parent=11 // pred_check
          %p414 = pneg %p155
        $region22: #{tpu_custom_call.1} parent=11 // pred_check_branch
          %416 = sbr.rel (%p414) target = $region24
        $region23: #{tpu_custom_call.1} parent=11 // pred_region
          _
        $region24: #{tpu_custom_call.1} parent=11 // pred_fallthru
          _
        // Predicated region
        $region25: #{tpu_custom_call.1} parent=11 // pred_check
          %p417 = pneg %p176
        $region26: #{tpu_custom_call.1} parent=11 // pred_check_branch
          %419 = sbr.rel (%p417) target = $region28
        $region27: #{tpu_custom_call.1} parent=11 // pred_region
          %s421 = ssub.s32 256, 256
          %422 = vsyncadd [#allocation3], %s421
          %s423 = sshll.u32 [#allocation2], 4
          %s424 = int_to_ptr.vmem [resolvable:$true] %s423
          %429 = dma.hbm_to_vmem [thread:$0]  %s5, 256, %s424, [#allocation3], 64, 64, 4
        $region28: #{tpu_custom_call.1} parent=11 // pred_fallthru
          _
        // Predicated region
        $region29: #{tpu_custom_call.1} parent=11 // pred_check
          %p430 = pneg %p197
        $region30: #{tpu_custom_call.1} parent=11 // pred_check_branch
          %432 = sbr.rel (%p430) target = $region32
        $region31: #{tpu_custom_call.1} parent=11 // pred_region
          _
        $region32: #{tpu_custom_call.1} parent=11 // pred_fallthru
          _
        // Predicated region
        $region33: #{tpu_custom_call.1} parent=11 // pred_check
          %p433 = pneg %p218
        $region34: #{tpu_custom_call.1} parent=11 // pred_check_branch
          %435 = sbr.rel (%p433) target = $region36
        $region35: #{tpu_custom_call.1} parent=11 // pred_region
          %s437 = ssub.s32 256, 256
          %438 = vsyncadd [#allocation6], %s437
          %s439 = sshll.u32 [#allocation5], 4
          %s440 = int_to_ptr.vmem [resolvable:$true] %s439
          %445 = dma.hbm_to_vmem [thread:$0]  %s7, 256, %s440, [#allocation6], 64, 64, 4
        $region36: #{tpu_custom_call.1} parent=11 // pred_fallthru
          _
        // Predicated region
        $region37: #{tpu_custom_call.1} parent=11 // pred_check
          %p446 = pneg %p239
        $region38: #{tpu_custom_call.1} parent=11 // pred_check_branch
          %448 = sbr.rel (%p446) target = $region40
        $region39: #{tpu_custom_call.1} parent=11 // pred_region
          _
        $region40: #{tpu_custom_call.1} parent=11 // pred_fallthru
          _
        // Predicated region
        $region41: #{tpu_custom_call.1} parent=11 // pred_check
          %p449 = pneg %p260
        $region42: #{tpu_custom_call.1} parent=11 // pred_check_branch
          %451 = sbr.rel (%p449) target = $region44
        $region43: #{tpu_custom_call.1} parent=11 // pred_region
          _
        $region44: #{tpu_custom_call.1} parent=11 // pred_fallthru
          _
        // Predicated region
        $region45: #{tpu_custom_call.1} parent=11 // pred_check
          %p452 = pneg %p281
        $region46: #{tpu_custom_call.1} parent=11 // pred_check_branch
          %454 = sbr.rel (%p452) target = $region48
        $region47: #{tpu_custom_call.1} parent=11 // pred_region
          _
        $region48: #{tpu_custom_call.1} parent=11 // pred_fallthru
          _
        // Predicated region
        $region49: #{tpu_custom_call.1} parent=11 // pred_check
          %p455 = pneg %p302
        $region50: #{tpu_custom_call.1} parent=11 // pred_check_branch
          %457 = sbr.rel (%p455) target = $region52
        $region51: #{tpu_custom_call.1} parent=11 // pred_region
          _
        $region52: #{tpu_custom_call.1} parent=11 // pred_fallthru
          _
        // Predicated region
        $region53: #{tpu_custom_call.1} parent=11 // pred_check
          %p458 = pneg %p323
        $region54: #{tpu_custom_call.1} parent=11 // pred_check_branch
          %460 = sbr.rel (%p458) target = $region56
        $region55: #{tpu_custom_call.1} parent=11 // pred_region
          _
        $region56: #{tpu_custom_call.1} parent=11 // pred_fallthru
          _
        // Predicated region
        $region57: #{tpu_custom_call.1} parent=11 // pred_check
          %p461 = pneg %p344
        $region58: #{tpu_custom_call.1} parent=11 // pred_check_branch
          %463 = sbr.rel (%p461) target = $region60
        $region59: #{tpu_custom_call.1} parent=11 // pred_region
          _
        $region60: #{tpu_custom_call.1} parent=11 // pred_fallthru
          _
        // Predicated region
        $region61: #{tpu_custom_call.1} parent=11 // pred_check
          %p464 = pneg %p365
        $region62: #{tpu_custom_call.1} parent=11 // pred_check_branch
          %466 = sbr.rel (%p464) target = $region64
        $region63: #{tpu_custom_call.1} parent=11 // pred_region
          _
        $region64: #{tpu_custom_call.1} parent=11 // pred_fallthru
          _
      $region12: #{tpu_custom_call.1} parent=5 // pred_fallthru
        _
      %p467 = scmp.lt.s32.totalorder %s26, 2
      // Predicated region
      $region65: #{tpu_custom_call.1} parent=5 // pred_check
        %p468 = pneg %p467
      $region66: #{tpu_custom_call.1} parent=5 // pred_check_branch
        %470 = sbr.rel (%p468) target = $region68
      $region67: #{tpu_custom_call.1} parent=5 // pred_region
        // Predicated region
        $region69: #{tpu_custom_call.1} parent=67 // pred_check
          %p471 = pneg %p60
        $region70: #{tpu_custom_call.1} parent=67 // pred_check_branch
          %473 = sbr.rel (%p471) target = $region72
        $region71: #{tpu_custom_call.1} parent=67 // pred_region
          %p474 = scmp.lt.s32.totalorder %s33, 1
          %s475 = scalar_select %p474, %s33, 1
          %p476 = scmp.lt.s32.totalorder %s34, 0
          %s477 = scalar_select %p476, %s34, 0
          %s478 = sadd.s32 %s477, %s475
          %s479 = smul.addr %s478, 8
          %s480 = scalar_lea.vmem %s0, %s479
        $region72: #{tpu_custom_call.1} parent=67 // pred_fallthru
          _
        // Predicated region
        $region73: #{tpu_custom_call.1} parent=67 // pred_check
          %p481 = pneg %p86
        $region74: #{tpu_custom_call.1} parent=67 // pred_check_branch
          %483 = sbr.rel (%p481) target = $region76
        $region75: #{tpu_custom_call.1} parent=67 // pred_region
          %p484 = scmp.lt.s32.totalorder %s33, 1
          %s485 = scalar_select %p484, %s33, 1
          %s486 = smul.addr %s485, 8
          %s487 = scalar_lea.vmem %s1, %s486
        $region76: #{tpu_custom_call.1} parent=67 // pred_fallthru
          _
      $region68: #{tpu_custom_call.1} parent=5 // pred_fallthru
        _
      %p488 = scmp.le.s32.totalorder 1, %s26
      %p489 = scmp.lt.s32.totalorder %s26, 3
      %p490 = pnand %p488, %p489
      %p491 = pneg %p490
      // Predicated region
      $region77: #{tpu_custom_call.1} parent=5 // pred_check
        _
      $region78: #{tpu_custom_call.1} parent=5 // pred_check_branch
        %493 = sbr.rel (%p490) target = $region80
      $region79: #{tpu_custom_call.1} parent=5 // pred_region
        %s494 = ssub.s32 %s26, 1
        // Predicated region
        $region81: #{tpu_custom_call.1} parent=79 // pred_check
          %p495 = pneg %p176
        $region82: #{tpu_custom_call.1} parent=79 // pred_check_branch
          %497 = sbr.rel (%p495) target = $region84
        $region83: #{tpu_custom_call.1} parent=79 // pred_region
          %498 = dma.done [#allocation3], 256
        $region84: #{tpu_custom_call.1} parent=79 // pred_fallthru
          _
        // Predicated region
        $region85: #{tpu_custom_call.1} parent=79 // pred_check
          %p499 = pneg %p218
        $region86: #{tpu_custom_call.1} parent=79 // pred_check_branch
          %501 = sbr.rel (%p499) target = $region88
        $region87: #{tpu_custom_call.1} parent=79 // pred_region
          %502 = dma.done [#allocation6], 256
        $region88: #{tpu_custom_call.1} parent=79 // pred_fallthru
          _
        %p503 = scmp.lt.s32.totalorder %s35, 1
        %s504 = scalar_select %p503, %s35, 1
        %p505 = scmp.lt.s32.totalorder %s36, 0
        %s506 = scalar_select %p505, %s36, 0
        %s507 = sadd.s32 %s506, %s504
        %s508 = smul.addr %s507, 8
        %s509 = scalar_lea.vmem %s0, %s508
        %p510 = pneg %p66
        %p511 = pneg %p63
        %p512 = scmp.lt.s32.totalorder %s35, 1
        %s513 = scalar_select %p512, %s35, 1
        %s514 = smul.addr %s513, 8
        %s515 = scalar_lea.vmem %s1, %s514
        %p516 = pneg %p92
        %p517 = pneg %p89
        %p518 = pneg %p113
        %p519 = pneg %p110
        %p520 = pneg %p134
        %p521 = pneg %p131
        %p522 = pneg %p155
        %p523 = pneg %p152
        %p524 = pneg %p176
        %p525 = pneg %p173
        %p526 = pneg %p197
        %p527 = pneg %p194
        %p528 = pneg %p218
        %p529 = pneg %p215
        %p530 = pneg %p239
        %p531 = pneg %p236
        %p532 = pneg %p260
        %p533 = pneg %p257
        %p534 = pneg %p281
        %p535 = pneg %p278
        %p536 = pneg %p302
        %p537 = pneg %p299
        %p538 = pneg %p323
        %p539 = pneg %p320
        %p540 = pneg %p344
        %p541 = pneg %p341
        %p542 = pneg %p365
        %p543 = pneg %p362
        %p544 = pneg %p393
        %p545 = pneg %p390
        %s546 = sand.u32 %s380, 1
        %s547 = scalar_lea.sflag [#allocation4], %s546
        %s548 = sand.u32 %s380, 1
        %s549 = smul.addr %s548, 8
        %s550 = scalar_lea.vmem [#allocation7], %s549
        %p551 = scmp.lt.s32.totalorder %s35, 1
        %s552 = scalar_select %p551, %s35, 1
        %p553 = scmp.lt.s32.totalorder %s36, 0
        %s554 = scalar_select %p553, %s36, 0
        %s555 = sadd.s32 %s554, %s552
        %s556 = smul.addr %s555, 8
        %s557 = scalar_lea.vmem %s0, %s556
        %p558 = scmp.lt.s32.totalorder %s35, 1
        %s559 = scalar_select %p558, %s35, 1
        %s560 = smul.addr %s559, 8
        %s561 = scalar_lea.vmem %s1, %s560
        %v563 = vld [vmem:[%s557] sm:$0xff]
        %v564 = vpack.c.bf16 %v563, %v563
        %v565 = vld [vmem:[%s561] sm:$0xff]
        %v566 = vpack.c.bf16 %v565, %v565
        %v567 = vld [vmem:[%s2] sm:$0xf]
        %v568 = vld [vmem:[%s2 + $0x4] sm:$0xf]
        %v569 = vld [vmem:[%s2 + $0x8] sm:$0xf]
        %v570 = vld [vmem:[%s2 + $0xc] sm:$0xf]
        %v575 = vunpack.c.l.b16 %v567
        %v576 = vunpack.c.l.b16 %v568
        %v577 = vunpack.c.l.b16 %v569
        %v578 = vunpack.c.l.b16 %v570
        %v579 = vpack.c.b16 %v576, %v575
        %v580 = vpack.c.b16 %v578, %v577
        %vm583 = vcmask 261120
        %v585 = vsel %vm583, %v564, 0
        %587 = vmatprep.subr.bf16.mxu0 0
        %588 = vmatpush1.bf16.msra.mxu0 %v579
        %589 = vmatprep.subr.bf16.mxu0 0
        %590 = vmatpush1.bf16.msra.mxu0 %v580
        %591 = vmatprep.subr.bf16.mxu0 0
        %592 = vmatpush1.bf16.msra.mxu0 0
        %593 = vmatprep.subr.bf16.mxu0 0
        %594 = vmatpush1.bf16.msra.mxu0 0
        %595 = vmatprep.subr.bf16.mxu0 0
        %596 = vmatpush1.bf16.msra.mxu0 0
        %597 = vmatprep.subr.bf16.mxu0 0
        %598 = vmatpush1.bf16.msra.mxu0 0
        %599 = vmatprep.subr.bf16.mxu0 0
        %600 = vmatpush1.bf16.msra.mxu0 0
        %601 = vmatprep.subr.bf16.mxu0 0
        %602 = vmatpush1.bf16.msra.mxu0 0
        %603 = vmatprep.subr.bf16.mxu0 0
        %604 = vmatpush1.bf16.msra.mxu0 0
        %605 = vmatprep.subr.bf16.mxu0 0
        %606 = vmatpush1.bf16.msra.mxu0 0
        %607 = vmatprep.subr.bf16.mxu0 0
        %608 = vmatpush1.bf16.msra.mxu0 0
        %609 = vmatprep.subr.bf16.mxu0 0
        %610 = vmatpush1.bf16.msra.mxu0 0
        %611 = vmatprep.subr.bf16.mxu0 0
        %612 = vmatpush1.bf16.msra.mxu0 0
        %613 = vmatprep.subr.bf16.mxu0 0
        %614 = vmatpush1.bf16.msra.mxu0 0
        %615 = vmatprep.subr.bf16.mxu0 0
        %616 = vmatpush1.bf16.msra.mxu0 0
        %617 = vmatprep.subr.bf16.mxu0 0
        %618 = vmatpush1.bf16.msra.mxu0 0
        %619 = vmatprep.mubr.bf16.mxu0 0
        %620 = vmatmul.mubr.bf16.gmra.mrb[0].mxu0 %v585
        %v621 = vpop.f32.mrb[0].mxu0
        %v622 = vadd.f32 0.0, %v621
        %v623 = vpop.f32.mrb[0].mxu0
        %v624 = vpop.f32.mrb[0].mxu0
        %v625 = vpop.f32.mrb[0].mxu0
        %626 = vdwg.mxu0
        %v627 = vld [vmem:[%s3] sm:$0xf]
        %v628 = vld [vmem:[%s3 + $0x4] sm:$0xf]
        %v629 = vld [vmem:[%s3 + $0x8] sm:$0xf]
        %v630 = vld [vmem:[%s3 + $0xc] sm:$0xf]
        %v635 = vunpack.c.l.b16 %v627
        %v636 = vunpack.c.l.b16 %v628
        %v637 = vunpack.c.l.b16 %v629
        %v638 = vunpack.c.l.b16 %v630
        %v639 = vpack.c.b16 %v636, %v635
        %v640 = vpack.c.b16 %v638, %v637
        %v644 = vsel %vm583, %v566, 0
        %646 = vmatprep.subr.bf16.mxu0 0
        %647 = vmatpush1.bf16.msra.mxu0 %v639
        %648 = vmatprep.subr.bf16.mxu0 0
        %649 = vmatpush1.bf16.msra.mxu0 %v640
        %650 = vmatprep.subr.bf16.mxu0 0
        %651 = vmatpush1.bf16.msra.mxu0 0
        %652 = vmatprep.subr.bf16.mxu0 0
        %653 = vmatpush1.bf16.msra.mxu0 0
        %654 = vmatprep.subr.bf16.mxu0 0
        %655 = vmatpush1.bf16.msra.mxu0 0
        %656 = vmatprep.subr.bf16.mxu0 0
        %657 = vmatpush1.bf16.msra.mxu0 0
        %658 = vmatprep.subr.bf16.mxu0 0
        %659 = vmatpush1.bf16.msra.mxu0 0
        %660 = vmatprep.subr.bf16.mxu0 0
        %661 = vmatpush1.bf16.msra.mxu0 0
        %662 = vmatprep.subr.bf16.mxu0 0
        %663 = vmatpush1.bf16.msra.mxu0 0
        %664 = vmatprep.subr.bf16.mxu0 0
        %665 = vmatpush1.bf16.msra.mxu0 0
        %666 = vmatprep.subr.bf16.mxu0 0
        %667 = vmatpush1.bf16.msra.mxu0 0
        %668 = vmatprep.subr.bf16.mxu0 0
        %669 = vmatpush1.bf16.msra.mxu0 0
        %670 = vmatprep.subr.bf16.mxu0 0
        %671 = vmatpush1.bf16.msra.mxu0 0
        %672 = vmatprep.subr.bf16.mxu0 0
        %673 = vmatpush1.bf16.msra.mxu0 0
        %674 = vmatprep.subr.bf16.mxu0 0
        %675 = vmatpush1.bf16.msra.mxu0 0
        %676 = vmatprep.subr.bf16.mxu0 0
        %677 = vmatpush1.bf16.msra.mxu0 0
        %678 = vmatprep.mubr.bf16.mxu0 0
        %679 = vmatmul.mubr.bf16.gmra.mrb[0].mxu0 %v644
        %v680 = vpop.f32.mrb[0].mxu0
        %v681 = vadd.f32 0.0, %v680
        %v682 = vpop.f32.mrb[0].mxu0
        %v683 = vpop.f32.mrb[0].mxu0
        %v684 = vpop.f32.mrb[0].mxu0
        %685 = vdwg.mxu0
        %v686 = vld [vmem:[%s4] sm:$0xf]
        %v687 = vld [vmem:[%s4 + $0x4] sm:$0xf]
        %v688 = vld [vmem:[%s4 + $0x8] sm:$0xf]
        %v689 = vld [vmem:[%s4 + $0xc] sm:$0xf]
        %v694 = vunpack.c.l.b16 %v686
        %v695 = vunpack.c.l.b16 %v687
        %v696 = vunpack.c.l.b16 %v688
        %v697 = vunpack.c.l.b16 %v689
        %v698 = vpack.c.b16 %v695, %v694
        %v699 = vpack.c.b16 %v697, %v696
        %702 = vmatprep.subr.bf16.mxu0 0
        %703 = vmatpush1.bf16.msra.mxu0 %v698
        %704 = vmatprep.subr.bf16.mxu0 0
        %705 = vmatpush1.bf16.msra.mxu0 %v699
        %706 = vmatprep.subr.bf16.mxu0 0
        %707 = vmatpush1.bf16.msra.mxu0 0
        %708 = vmatprep.subr.bf16.mxu0 0
        %709 = vmatpush1.bf16.msra.mxu0 0
        %710 = vmatprep.subr.bf16.mxu0 0
        %711 = vmatpush1.bf16.msra.mxu0 0
        %712 = vmatprep.subr.bf16.mxu0 0
        %713 = vmatpush1.bf16.msra.mxu0 0
        %714 = vmatprep.subr.bf16.mxu0 0
        %715 = vmatpush1.bf16.msra.mxu0 0
        %716 = vmatprep.subr.bf16.mxu0 0
        %717 = vmatpush1.bf16.msra.mxu0 0
        %718 = vmatprep.subr.bf16.mxu0 0
        %719 = vmatpush1.bf16.msra.mxu0 0
        %720 = vmatprep.subr.bf16.mxu0 0
        %721 = vmatpush1.bf16.msra.mxu0 0
        %722 = vmatprep.subr.bf16.mxu0 0
        %723 = vmatpush1.bf16.msra.mxu0 0
        %724 = vmatprep.subr.bf16.mxu0 0
        %725 = vmatpush1.bf16.msra.mxu0 0
        %726 = vmatprep.subr.bf16.mxu0 0
        %727 = vmatpush1.bf16.msra.mxu0 0
        %728 = vmatprep.subr.bf16.mxu0 0
        %729 = vmatpush1.bf16.msra.mxu0 0
        %730 = vmatprep.subr.bf16.mxu0 0
        %731 = vmatpush1.bf16.msra.mxu0 0
        %732 = vmatprep.subr.bf16.mxu0 0
        %733 = vmatpush1.bf16.msra.mxu0 0
        %734 = vmatprep.mubr.bf16.mxu0 0
        %735 = vmatmul.mubr.bf16.gmra.mrb[0].mxu0 %v644
        %v736 = vpop.f32.mrb[0].mxu0
        %v737 = vadd.f32 0.0, %v736
        %v738 = vpop.f32.mrb[0].mxu0
        %v739 = vpop.f32.mrb[0].mxu0
        %v740 = vpop.f32.mrb[0].mxu0
        %741 = vdwg.mxu0
        %v742 = vpack.c.bf16 %v622, %v622
        %v743 = vpack.c.bf16 %v681, %v681
        %v744 = vpack.c.bf16 %v737, %v737
        %v745 = vld [vmem:[#allocation2] sm:$0xf]
        %v746 = vld [vmem:[#allocation2 + $0x4] sm:$0xf]
        %v747 = vld [vmem:[#allocation2 + $0x8] sm:$0xf]
        %v748 = vld [vmem:[#allocation2 + $0xc] sm:$0xf]
        %s749 = smul.u32 %s36, 8
        %v750 = vlaneseq
        %v751 = vshrl.u32 %v750, 7
        %v752 = vstv %s749
        %v753 = vadd.s32 %v752, %v751
        %v754 = vlaneseq
        %v755 = vand.u32 %v754, 127
        %vm756 = vcmp.le.s32.totalorder %v755, %v753
        %v757 = vsel %vm756, 0.0, -1e+30
        %vm758 = vcmask 64512
        %v760 = vsel %vm758, %v742, 0
        %v763 = vsel %vm758, %v743, 0
        %765 = vmatprep.subr.bf16.mxu0 0
        %766 = vmatpush1.bf16.xpose.msra.mxu0 %v763
        %767 = vmatprep.subr.bf16.mxu0 0
        %768 = vmatpush1.bf16.xpose.msra.mxu0 0
        %769 = vmatprep.subr.bf16.mxu0 0
        %770 = vmatpush1.bf16.xpose.msra.mxu0 0
        %771 = vmatprep.subr.bf16.mxu0 0
        %772 = vmatpush1.bf16.xpose.msra.mxu0 0
        %773 = vmatprep.subr.bf16.mxu0 0
        %774 = vmatpush1.bf16.xpose.msra.mxu0 0
        %775 = vmatprep.subr.bf16.mxu0 0
        %776 = vmatpush1.bf16.xpose.msra.mxu0 0
        %777 = vmatprep.subr.bf16.mxu0 0
        %778 = vmatpush1.bf16.xpose.msra.mxu0 0
        %779 = vmatprep.subr.bf16.mxu0 0
        %780 = vmatpush1.bf16.xpose.msra.mxu0 0
        %781 = vmatprep.subr.bf16.mxu0 0
        %782 = vmatpush1.bf16.xpose.msra.mxu0 0
        %783 = vmatprep.subr.bf16.mxu0 0
        %784 = vmatpush1.bf16.xpose.msra.mxu0 0
        %785 = vmatprep.subr.bf16.mxu0 0
        %786 = vmatpush1.bf16.xpose.msra.mxu0 0
        %787 = vmatprep.subr.bf16.mxu0 0
        %788 = vmatpush1.bf16.xpose.msra.mxu0 0
        %789 = vmatprep.subr.bf16.mxu0 0
        %790 = vmatpush1.bf16.xpose.msra.mxu0 0
        %791 = vmatprep.subr.bf16.mxu0 0
        %792 = vmatpush1.bf16.xpose.msra.mxu0 0
        %793 = vmatprep.subr.bf16.mxu0 0
        %794 = vmatpush1.bf16.xpose.msra.mxu0 0
        %795 = vmatprep.subr.bf16.mxu0 0
        %796 = vmatpush1.bf16.xpose.msra.mxu0 0
        %797 = vmatprep.mubr.bf16.mxu0 0
        %798 = vmatmul.mubr.bf16.gmra.mrb[0].mxu0 %v760
        %v799 = vpop.f32.mrb[0].mxu0
        %v800 = vadd.f32 0.0, %v799
        %v801 = vpop.f32.mrb[0].mxu0
        %v802 = vpop.f32.mrb[0].mxu0
        %v803 = vpop.f32.mrb[0].mxu0
        %804 = vdwg.mxu0
        %v805 = vmul.f32 %v800, 2.828427
        %v806 = vadd.f32 %v805, %v757
        %v807 = vsel %vm758, %v806, -inf
        %808 = vmax.xlane.f32.xlu0 %v807
        %v809 = vpop.xlane.xlu0 %808
        %v810 = vsub.f32 %v806, %v809
        %v811 = vmul.f32 %v810, 1.442695
        %v812 = vpow.pop %v811
        %v813 = vsel %vm758, %v812, 0.0
        %814 = vadd.xlane.f32.xlu0 %v813
        %v815 = vpop.xlane.xlu0 %814
        %v816 = vrcp.pop %v815
        %v817 = vmul.f32 %v812, %v816
        %v818 = vpack.c.bf16 %v817, %v817
        %v820 = vsel %vm758, %v818, 0
        %vm822 = vcmask 1043456
        %v824 = vsel %vm822, %v744, 0
        %826 = vmatprep.subr.bf16.mxu0 0
        %827 = vmatpush1.bf16.msra.mxu0 %v824
        %828 = vmatprep.subr.bf16.mxu0 0
        %829 = vmatpush1.bf16.msra.mxu0 0
        %830 = vmatprep.subr.bf16.mxu0 0
        %831 = vmatpush1.bf16.msra.mxu0 0
        %832 = vmatprep.subr.bf16.mxu0 0
        %833 = vmatpush1.bf16.msra.mxu0 0
        %834 = vmatprep.subr.bf16.mxu0 0
        %835 = vmatpush1.bf16.msra.mxu0 0
        %836 = vmatprep.subr.bf16.mxu0 0
        %837 = vmatpush1.bf16.msra.mxu0 0
        %838 = vmatprep.subr.bf16.mxu0 0
        %839 = vmatpush1.bf16.msra.mxu0 0
        %840 = vmatprep.subr.bf16.mxu0 0
        %841 = vmatpush1.bf16.msra.mxu0 0
        %842 = vmatprep.subr.bf16.mxu0 0
        %843 = vmatpush1.bf16.msra.mxu0 0
        %844 = vmatprep.subr.bf16.mxu0 0
        %845 = vmatpush1.bf16.msra.mxu0 0
        %846 = vmatprep.subr.bf16.mxu0 0
        %847 = vmatpush1.bf16.msra.mxu0 0
        %848 = vmatprep.subr.bf16.mxu0 0
        %849 = vmatpush1.bf16.msra.mxu0 0
        %850 = vmatprep.subr.bf16.mxu0 0
        %851 = vmatpush1.bf16.msra.mxu0 0
        %852 = vmatprep.subr.bf16.mxu0 0
        %853 = vmatpush1.bf16.msra.mxu0 0
        %854 = vmatprep.subr.bf16.mxu0 0
        %855 = vmatpush1.bf16.msra.mxu0 0
        %856 = vmatprep.subr.bf16.mxu0 0
        %857 = vmatpush1.bf16.msra.mxu0 0
        %858 = vmatprep.mubr.bf16.mxu0 0
        %859 = vmatmul.mubr.bf16.gmra.mrb[0].mxu0 %v820
        %v860 = vpop.f32.mrb[0].mxu0
        %v861 = vadd.f32 0.0, %v860
        %v862 = vpop.f32.mrb[0].mxu0
        %v863 = vpop.f32.mrb[0].mxu0
        %v864 = vpop.f32.mrb[0].mxu0
        %865 = vdwg.mxu0
        %v866 = vpack.c.bf16 %v861, %v861
        %868 = vrot.lane.b32.xlu0 %v742, 120
        %v869 = vpop.permute.xlu0 %868
        %871 = vrot.lane.b32.xlu0 %v743, 120
        %v872 = vpop.permute.xlu0 %871
        %v874 = vsel %vm758, %v869, 0
        %v877 = vsel %vm758, %v872, 0
        %879 = vmatprep.subr.bf16.mxu0 0
        %880 = vmatpush1.bf16.xpose.msra.mxu0 %v877
        %881 = vmatprep.subr.bf16.mxu0 0
        %882 = vmatpush1.bf16.xpose.msra.mxu0 0
        %883 = vmatprep.subr.bf16.mxu0 0
        %884 = vmatpush1.bf16.xpose.msra.mxu0 0
        %885 = vmatprep.subr.bf16.mxu0 0
        %886 = vmatpush1.bf16.xpose.msra.mxu0 0
        %887 = vmatprep.subr.bf16.mxu0 0
        %888 = vmatpush1.bf16.xpose.msra.mxu0 0
        %889 = vmatprep.subr.bf16.mxu0 0
        %890 = vmatpush1.bf16.xpose.msra.mxu0 0
        %891 = vmatprep.subr.bf16.mxu0 0
        %892 = vmatpush1.bf16.xpose.msra.mxu0 0
        %893 = vmatprep.subr.bf16.mxu0 0
        %894 = vmatpush1.bf16.xpose.msra.mxu0 0
        %895 = vmatprep.subr.bf16.mxu0 0
        %896 = vmatpush1.bf16.xpose.msra.mxu0 0
        %897 = vmatprep.subr.bf16.mxu0 0
        %898 = vmatpush1.bf16.xpose.msra.mxu0 0
        %899 = vmatprep.subr.bf16.mxu0 0
        %900 = vmatpush1.bf16.xpose.msra.mxu0 0
        %901 = vmatprep.subr.bf16.mxu0 0
        %902 = vmatpush1.bf16.xpose.msra.mxu0 0
        %903 = vmatprep.subr.bf16.mxu0 0
        %904 = vmatpush1.bf16.xpose.msra.mxu0 0
        %905 = vmatprep.subr.bf16.mxu0 0
        %906 = vmatpush1.bf16.xpose.msra.mxu0 0
        %907 = vmatprep.subr.bf16.mxu0 0
        %908 = vmatpush1.bf16.xpose.msra.mxu0 0
        %909 = vmatprep.subr.bf16.mxu0 0
        %910 = vmatpush1.bf16.xpose.msra.mxu0 0
        %911 = vmatprep.mubr.bf16.mxu0 0
        %912 = vmatmul.mubr.bf16.gmra.mrb[0].mxu0 %v874
        %v913 = vpop.f32.mrb[0].mxu0
        %v914 = vadd.f32 0.0, %v913
        %v915 = vpop.f32.mrb[0].mxu0
        %v916 = vpop.f32.mrb[0].mxu0
        %v917 = vpop.f32.mrb[0].mxu0
        %918 = vdwg.mxu0
        %v919 = vmul.f32 %v914, 2.828427
        %v920 = vadd.f32 %v919, %v757
        %v921 = vsel %vm758, %v920, -inf
        %922 = vmax.xlane.f32.xlu0 %v921
        %v923 = vpop.xlane.xlu0 %922
        %v924 = vsub.f32 %v920, %v923
        %v925 = vmul.f32 %v924, 1.442695
        %v926 = vpow.pop %v925
        %v927 = vsel %vm758, %v926, 0.0
        %928 = vadd.xlane.f32.xlu0 %v927
        %v929 = vpop.xlane.xlu0 %928
        %v930 = vrcp.pop %v929
        %v931 = vmul.f32 %v926, %v930
        %v932 = vpack.c.bf16 %v931, %v931
        %934 = vrot.lane.b32.xlu0 %v744, 120
        %v935 = vpop.permute.xlu0 %934
        %v937 = vsel %vm758, %v932, 0
        %v940 = vsel %vm822, %v935, 0
        %942 = vmatprep.subr.bf16.mxu0 0
        %943 = vmatpush1.bf16.msra.mxu0 %v940
        %944 = vmatprep.subr.bf16.mxu0 0
        %945 = vmatpush1.bf16.msra.mxu0 0
        %946 = vmatprep.subr.bf16.mxu0 0
        %947 = vmatpush1.bf16.msra.mxu0 0
        %948 = vmatprep.subr.bf16.mxu0 0
        %949 = vmatpush1.bf16.msra.mxu0 0
        %950 = vmatprep.subr.bf16.mxu0 0
        %951 = vmatpush1.bf16.msra.mxu0 0
        %952 = vmatprep.subr.bf16.mxu0 0
        %953 = vmatpush1.bf16.msra.mxu0 0
        %954 = vmatprep.subr.bf16.mxu0 0
        %955 = vmatpush1.bf16.msra.mxu0 0
        %956 = vmatprep.subr.bf16.mxu0 0
        %957 = vmatpush1.bf16.msra.mxu0 0
        %958 = vmatprep.subr.bf16.mxu0 0
        %959 = vmatpush1.bf16.msra.mxu0 0
        %960 = vmatprep.subr.bf16.mxu0 0
        %961 = vmatpush1.bf16.msra.mxu0 0
        %962 = vmatprep.subr.bf16.mxu0 0
        %963 = vmatpush1.bf16.msra.mxu0 0
        %964 = vmatprep.subr.bf16.mxu0 0
        %965 = vmatpush1.bf16.msra.mxu0 0
        %966 = vmatprep.subr.bf16.mxu0 0
        %967 = vmatpush1.bf16.msra.mxu0 0
        %968 = vmatprep.subr.bf16.mxu0 0
        %969 = vmatpush1.bf16.msra.mxu0 0
        %970 = vmatprep.subr.bf16.mxu0 0
        %971 = vmatpush1.bf16.msra.mxu0 0
        %972 = vmatprep.subr.bf16.mxu0 0
        %973 = vmatpush1.bf16.msra.mxu0 0
        %974 = vmatprep.mubr.bf16.mxu0 0
        %975 = vmatmul.mubr.bf16.gmra.mrb[0].mxu0 %v937
        %v976 = vpop.f32.mrb[0].mxu0
        %v977 = vadd.f32 0.0, %v976
        %v978 = vpop.f32.mrb[0].mxu0
        %v979 = vpop.f32.mrb[0].mxu0
        %v980 = vpop.f32.mrb[0].mxu0
        %981 = vdwg.mxu0
        %v982 = vpack.c.bf16 %v977, %v977
        %v984 = vsel %vm758, %v982, 0
        %v987 = vsel %vm822, %v746, 0
        %989 = vmatprep.subr.bf16.mxu0 0
        %990 = vmatpush1.bf16.msra.mxu0 %v987
        %991 = vmatprep.subr.bf16.mxu0 0
        %992 = vmatpush1.bf16.msra.mxu0 0
        %993 = vmatprep.subr.bf16.mxu0 0
        %994 = vmatpush1.bf16.msra.mxu0 0
        %995 = vmatprep.subr.bf16.mxu0 0
        %996 = vmatpush1.bf16.msra.mxu0 0
        %997 = vmatprep.subr.bf16.mxu0 0
        %998 = vmatpush1.bf16.msra.mxu0 0
        %999 = vmatprep.subr.bf16.mxu0 0
        %1000 = vmatpush1.bf16.msra.mxu0 0
        %1001 = vmatprep.subr.bf16.mxu0 0
        %1002 = vmatpush1.bf16.msra.mxu0 0
        %1003 = vmatprep.subr.bf16.mxu0 0
        %1004 = vmatpush1.bf16.msra.mxu0 0
        %1005 = vmatprep.subr.bf16.mxu0 0
        %1006 = vmatpush1.bf16.msra.mxu0 0
        %1007 = vmatprep.subr.bf16.mxu0 0
        %1008 = vmatpush1.bf16.msra.mxu0 0
        %1009 = vmatprep.subr.bf16.mxu0 0
        %1010 = vmatpush1.bf16.msra.mxu0 0
        %1011 = vmatprep.subr.bf16.mxu0 0
        %1012 = vmatpush1.bf16.msra.mxu0 0
        %1013 = vmatprep.subr.bf16.mxu0 0
        %1014 = vmatpush1.bf16.msra.mxu0 0
        %1015 = vmatprep.subr.bf16.mxu0 0
        %1016 = vmatpush1.bf16.msra.mxu0 0
        %1017 = vmatprep.subr.bf16.mxu0 0
        %1018 = vmatpush1.bf16.msra.mxu0 0
        %1019 = vmatprep.subr.bf16.mxu0 0
        %1020 = vmatpush1.bf16.msra.mxu0 0
        %1021 = vmatprep.mubr.bf16.mxu0 0
        %1022 = vmatmul.mubr.bf16.gmra.mrb[0].mxu0 %v984
        %v1023 = vpop.f32.mrb[0].mxu0
        %v1024 = vadd.f32 0.0, %v1023
        %v1025 = vpop.f32.mrb[0].mxu0
        %v1026 = vpop.f32.mrb[0].mxu0
        %v1027 = vpop.f32.mrb[0].mxu0
        %1028 = vdwg.mxu0
        %v1030 = vsel %vm758, %v866, 0
        %v1033 = vsel %vm822, %v745, 0
        %1035 = vmatprep.subr.bf16.mxu0 0
        %1036 = vmatpush1.bf16.msra.mxu0 %v1033
        %1037 = vmatprep.subr.bf16.mxu0 0
        %1038 = vmatpush1.bf16.msra.mxu0 0
        %1039 = vmatprep.subr.bf16.mxu0 0
        %1040 = vmatpush1.bf16.msra.mxu0 0
        %1041 = vmatprep.subr.bf16.mxu0 0
        %1042 = vmatpush1.bf16.msra.mxu0 0
        %1043 = vmatprep.subr.bf16.mxu0 0
        %1044 = vmatpush1.bf16.msra.mxu0 0
        %1045 = vmatprep.subr.bf16.mxu0 0
        %1046 = vmatpush1.bf16.msra.mxu0 0
        %1047 = vmatprep.subr.bf16.mxu0 0
        %1048 = vmatpush1.bf16.msra.mxu0 0
        %1049 = vmatprep.subr.bf16.mxu0 0
        %1050 = vmatpush1.bf16.msra.mxu0 0
        %1051 = vmatprep.subr.bf16.mxu0 0
        %1052 = vmatpush1.bf16.msra.mxu0 0
        %1053 = vmatprep.subr.bf16.mxu0 0
        %1054 = vmatpush1.bf16.msra.mxu0 0
        %1055 = vmatprep.subr.bf16.mxu0 0
        %1056 = vmatpush1.bf16.msra.mxu0 0
        %1057 = vmatprep.subr.bf16.mxu0 0
        %1058 = vmatpush1.bf16.msra.mxu0 0
        %1059 = vmatprep.subr.bf16.mxu0 0
        %1060 = vmatpush1.bf16.msra.mxu0 0
        %1061 = vmatprep.subr.bf16.mxu0 0
        %1062 = vmatpush1.bf16.msra.mxu0 0
        %1063 = vmatprep.subr.bf16.mxu0 0
        %1064 = vmatpush1.bf16.msra.mxu0 0
        %1065 = vmatprep.subr.bf16.mxu0 0
        %1066 = vmatpush1.bf16.msra.mxu0 0
        %1067 = vmatprep.mubr.bf16.mxu0 0
        %1068 = vmatmul.mubr.bf16.gmra.mrb[0].mxu0 %v1030
        %v1069 = vpop.f32.mrb[0].mxu0
        %v1070 = vadd.f32 %v1024, %v1069
        %v1071 = vpop.f32.mrb[0].mxu0
        %v1072 = vpop.f32.mrb[0].mxu0
        %v1073 = vpop.f32.mrb[0].mxu0
        %1074 = vdwg.mxu0
        %1075 = vrot.lane.b32.xlu0 %v742, 112
        %v1076 = vpop.permute.xlu0 %1075
        %1077 = vrot.lane.b32.xlu0 %v743, 112
        %v1078 = vpop.permute.xlu0 %1077
        %v1080 = vsel %vm758, %v1076, 0
        %v1083 = vsel %vm758, %v1078, 0
        %1085 = vmatprep.subr.bf16.mxu0 0
        %1086 = vmatpush1.bf16.xpose.msra.mxu0 %v1083
        %1087 = vmatprep.subr.bf16.mxu0 0
        %1088 = vmatpush1.bf16.xpose.msra.mxu0 0
        %1089 = vmatprep.subr.bf16.mxu0 0
        %1090 = vmatpush1.bf16.xpose.msra.mxu0 0
        %1091 = vmatprep.subr.bf16.mxu0 0
        %1092 = vmatpush1.bf16.xpose.msra.mxu0 0
        %1093 = vmatprep.subr.bf16.mxu0 0
        %1094 = vmatpush1.bf16.xpose.msra.mxu0 0
        %1095 = vmatprep.subr.bf16.mxu0 0
        %1096 = vmatpush1.bf16.xpose.msra.mxu0 0
        %1097 = vmatprep.subr.bf16.mxu0 0
        %1098 = vmatpush1.bf16.xpose.msra.mxu0 0
        %1099 = vmatprep.subr.bf16.mxu0 0
        %1100 = vmatpush1.bf16.xpose.msra.mxu0 0
        %1101 = vmatprep.subr.bf16.mxu0 0
        %1102 = vmatpush1.bf16.xpose.msra.mxu0 0
        %1103 = vmatprep.subr.bf16.mxu0 0
        %1104 = vmatpush1.bf16.xpose.msra.mxu0 0
        %1105 = vmatprep.subr.bf16.mxu0 0
        %1106 = vmatpush1.bf16.xpose.msra.mxu0 0
        %1107 = vmatprep.subr.bf16.mxu0 0
        %1108 = vmatpush1.bf16.xpose.msra.mxu0 0
        %1109 = vmatprep.subr.bf16.mxu0 0
        %1110 = vmatpush1.bf16.xpose.msra.mxu0 0
        %1111 = vmatprep.subr.bf16.mxu0 0
        %1112 = vmatpush1.bf16.xpose.msra.mxu0 0
        %1113 = vmatprep.subr.bf16.mxu0 0
        %1114 = vmatpush1.bf16.xpose.msra.mxu0 0
        %1115 = vmatprep.subr.bf16.mxu0 0
        %1116 = vmatpush1.bf16.xpose.msra.mxu0 0
        %1117 = vmatprep.mubr.bf16.mxu0 0
        %1118 = vmatmul.mubr.bf16.gmra.mrb[0].mxu0 %v1080
        %v1119 = vpop.f32.mrb[0].mxu0
        %v1120 = vadd.f32 0.0, %v1119
        %v1121 = vpop.f32.mrb[0].mxu0
        %v1122 = vpop.f32.mrb[0].mxu0
        %v1123 = vpop.f32.mrb[0].mxu0
        %1124 = vdwg.mxu0
        %v1125 = vmul.f32 %v1120, 2.828427
        %v1126 = vadd.f32 %v1125, %v757
        %v1127 = vsel %vm758, %v1126, -inf
        %1128 = vmax.xlane.f32.xlu0 %v1127
        %v1129 = vpop.xlane.xlu0 %1128
        %v1130 = vsub.f32 %v1126, %v1129
        %v1131 = vmul.f32 %v1130, 1.442695
        %v1132 = vpow.pop %v1131
        %v1133 = vsel %vm758, %v1132, 0.0
        %1134 = vadd.xlane.f32.xlu0 %v1133
        %v1135 = vpop.xlane.xlu0 %1134
        %v1136 = vrcp.pop %v1135
        %v1137 = vmul.f32 %v1132, %v1136
        %v1138 = vpack.c.bf16 %v1137, %v1137
        %1139 = vrot.lane.b32.xlu0 %v744, 112
        %v1140 = vpop.permute.xlu0 %1139
        %v1142 = vsel %vm758, %v1138, 0
        %v1145 = vsel %vm822, %v1140, 0
        %1147 = vmatprep.subr.bf16.mxu0 0
        %1148 = vmatpush1.bf16.msra.mxu0 %v1145
        %1149 = vmatprep.subr.bf16.mxu0 0
        %1150 = vmatpush1.bf16.msra.mxu0 0
        %1151 = vmatprep.subr.bf16.mxu0 0
        %1152 = vmatpush1.bf16.msra.mxu0 0
        %1153 = vmatprep.subr.bf16.mxu0 0
        %1154 = vmatpush1.bf16.msra.mxu0 0
        %1155 = vmatprep.subr.bf16.mxu0 0
        %1156 = vmatpush1.bf16.msra.mxu0 0
        %1157 = vmatprep.subr.bf16.mxu0 0
        %1158 = vmatpush1.bf16.msra.mxu0 0
        %1159 = vmatprep.subr.bf16.mxu0 0
        %1160 = vmatpush1.bf16.msra.mxu0 0
        %1161 = vmatprep.subr.bf16.mxu0 0
        %1162 = vmatpush1.bf16.msra.mxu0 0
        %1163 = vmatprep.subr.bf16.mxu0 0
        %1164 = vmatpush1.bf16.msra.mxu0 0
        %1165 = vmatprep.subr.bf16.mxu0 0
        %1166 = vmatpush1.bf16.msra.mxu0 0
        %1167 = vmatprep.subr.bf16.mxu0 0
        %1168 = vmatpush1.bf16.msra.mxu0 0
        %1169 = vmatprep.subr.bf16.mxu0 0
        %1170 = vmatpush1.bf16.msra.mxu0 0
        %1171 = vmatprep.subr.bf16.mxu0 0
        %1172 = vmatpush1.bf16.msra.mxu0 0
        %1173 = vmatprep.subr.bf16.mxu0 0
        %1174 = vmatpush1.bf16.msra.mxu0 0
        %1175 = vmatprep.subr.bf16.mxu0 0
        %1176 = vmatpush1.bf16.msra.mxu0 0
        %1177 = vmatprep.subr.bf16.mxu0 0
        %1178 = vmatpush1.bf16.msra.mxu0 0
        %1179 = vmatprep.mubr.bf16.mxu0 0
        %1180 = vmatmul.mubr.bf16.gmra.mrb[0].mxu0 %v1142
        %v1181 = vpop.f32.mrb[0].mxu0
        %v1182 = vadd.f32 0.0, %v1181
        %v1183 = vpop.f32.mrb[0].mxu0
        %v1184 = vpop.f32.mrb[0].mxu0
        %v1185 = vpop.f32.mrb[0].mxu0
        %1186 = vdwg.mxu0
        %v1187 = vpack.c.bf16 %v1182, %v1182
        %v1189 = vsel %vm758, %v1187, 0
        %v1192 = vsel %vm822, %v747, 0
        %1194 = vmatprep.subr.bf16.mxu0 0
        %1195 = vmatpush1.bf16.msra.mxu0 %v1192
        %1196 = vmatprep.subr.bf16.mxu0 0
        %1197 = vmatpush1.bf16.msra.mxu0 0
        %1198 = vmatprep.subr.bf16.mxu0 0
        %1199 = vmatpush1.bf16.msra.mxu0 0
        %1200 = vmatprep.subr.bf16.mxu0 0
        %1201 = vmatpush1.bf16.msra.mxu0 0
        %1202 = vmatprep.subr.bf16.mxu0 0
        %1203 = vmatpush1.bf16.msra.mxu0 0
        %1204 = vmatprep.subr.bf16.mxu0 0
        %1205 = vmatpush1.bf16.msra.mxu0 0
        %1206 = vmatprep.subr.bf16.mxu0 0
        %1207 = vmatpush1.bf16.msra.mxu0 0
        %1208 = vmatprep.subr.bf16.mxu0 0
        %1209 = vmatpush1.bf16.msra.mxu0 0
        %1210 = vmatprep.subr.bf16.mxu0 0
        %1211 = vmatpush1.bf16.msra.mxu0 0
        %1212 = vmatprep.subr.bf16.mxu0 0
        %1213 = vmatpush1.bf16.msra.mxu0 0
        %1214 = vmatprep.subr.bf16.mxu0 0
        %1215 = vmatpush1.bf16.msra.mxu0 0
        %1216 = vmatprep.subr.bf16.mxu0 0
        %1217 = vmatpush1.bf16.msra.mxu0 0
        %1218 = vmatprep.subr.bf16.mxu0 0
        %1219 = vmatpush1.bf16.msra.mxu0 0
        %1220 = vmatprep.subr.bf16.mxu0 0
        %1221 = vmatpush1.bf16.msra.mxu0 0
        %1222 = vmatprep.subr.bf16.mxu0 0
        %1223 = vmatpush1.bf16.msra.mxu0 0
        %1224 = vmatprep.subr.bf16.mxu0 0
        %1225 = vmatpush1.bf16.msra.mxu0 0
        %1226 = vmatprep.mubr.bf16.mxu0 0
        %1227 = vmatmul.mubr.bf16.gmra.mrb[0].mxu0 %v1189
        %v1228 = vpop.f32.mrb[0].mxu0
        %v1229 = vadd.f32 0.0, %v1228
        %v1230 = vpop.f32.mrb[0].mxu0
        %v1231 = vpop.f32.mrb[0].mxu0
        %v1232 = vpop.f32.mrb[0].mxu0
        %1233 = vdwg.mxu0
        %v1234 = vadd.f32 %v1070, %v1229
        %1235 = vrot.lane.b32.xlu0 %v742, 104
        %v1236 = vpop.permute.xlu0 %1235
        %1237 = vrot.lane.b32.xlu0 %v743, 104
        %v1238 = vpop.permute.xlu0 %1237
        %v1240 = vsel %vm758, %v1236, 0
        %v1243 = vsel %vm758, %v1238, 0
        %1245 = vmatprep.subr.bf16.mxu0 0
        %1246 = vmatpush1.bf16.xpose.msra.mxu0 %v1243
        %1247 = vmatprep.subr.bf16.mxu0 0
        %1248 = vmatpush1.bf16.xpose.msra.mxu0 0
        %1249 = vmatprep.subr.bf16.mxu0 0
        %1250 = vmatpush1.bf16.xpose.msra.mxu0 0
        %1251 = vmatprep.subr.bf16.mxu0 0
        %1252 = vmatpush1.bf16.xpose.msra.mxu0 0
        %1253 = vmatprep.subr.bf16.mxu0 0
        %1254 = vmatpush1.bf16.xpose.msra.mxu0 0
        %1255 = vmatprep.subr.bf16.mxu0 0
        %1256 = vmatpush1.bf16.xpose.msra.mxu0 0
        %1257 = vmatprep.subr.bf16.mxu0 0
        %1258 = vmatpush1.bf16.xpose.msra.mxu0 0
        %1259 = vmatprep.subr.bf16.mxu0 0
        %1260 = vmatpush1.bf16.xpose.msra.mxu0 0
        %1261 = vmatprep.subr.bf16.mxu0 0
        %1262 = vmatpush1.bf16.xpose.msra.mxu0 0
        %1263 = vmatprep.subr.bf16.mxu0 0
        %1264 = vmatpush1.bf16.xpose.msra.mxu0 0
        %1265 = vmatprep.subr.bf16.mxu0 0
        %1266 = vmatpush1.bf16.xpose.msra.mxu0 0
        %1267 = vmatprep.subr.bf16.mxu0 0
        %1268 = vmatpush1.bf16.xpose.msra.mxu0 0
        %1269 = vmatprep.subr.bf16.mxu0 0
        %1270 = vmatpush1.bf16.xpose.msra.mxu0 0
        %1271 = vmatprep.subr.bf16.mxu0 0
        %1272 = vmatpush1.bf16.xpose.msra.mxu0 0
        %1273 = vmatprep.subr.bf16.mxu0 0
        %1274 = vmatpush1.bf16.xpose.msra.mxu0 0
        %1275 = vmatprep.subr.bf16.mxu0 0
        %1276 = vmatpush1.bf16.xpose.msra.mxu0 0
        %1277 = vmatprep.mubr.bf16.mxu0 0
        %1278 = vmatmul.mubr.bf16.gmra.mrb[0].mxu0 %v1240
        %v1279 = vpop.f32.mrb[0].mxu0
        %v1280 = vadd.f32 0.0, %v1279
        %v1281 = vpop.f32.mrb[0].mxu0
        %v1282 = vpop.f32.mrb[0].mxu0
        %v1283 = vpop.f32.mrb[0].mxu0
        %1284 = vdwg.mxu0
        %v1285 = vmul.f32 %v1280, 2.828427
        %v1286 = vadd.f32 %v1285, %v757
        %v1287 = vsel %vm758, %v1286, -inf
        %1288 = vmax.xlane.f32.xlu0 %v1287
        %v1289 = vpop.xlane.xlu0 %1288
        %v1290 = vsub.f32 %v1286, %v1289
        %v1291 = vmul.f32 %v1290, 1.442695
        %v1292 = vpow.pop %v1291
        %v1293 = vsel %vm758, %v1292, 0.0
        %1294 = vadd.xlane.f32.xlu0 %v1293
        %v1295 = vpop.xlane.xlu0 %1294
        %v1296 = vrcp.pop %v1295
        %v1297 = vmul.f32 %v1292, %v1296
        %v1298 = vpack.c.bf16 %v1297, %v1297
        %1299 = vrot.lane.b32.xlu0 %v744, 104
        %v1300 = vpop.permute.xlu0 %1299
        %v1302 = vsel %vm758, %v1298, 0
        %v1305 = vsel %vm822, %v1300, 0
        %1307 = vmatprep.subr.bf16.mxu0 0
        %1308 = vmatpush1.bf16.msra.mxu0 %v1305
        %1309 = vmatprep.subr.bf16.mxu0 0
        %1310 = vmatpush1.bf16.msra.mxu0 0
        %1311 = vmatprep.subr.bf16.mxu0 0
        %1312 = vmatpush1.bf16.msra.mxu0 0
        %1313 = vmatprep.subr.bf16.mxu0 0
        %1314 = vmatpush1.bf16.msra.mxu0 0
        %1315 = vmatprep.subr.bf16.mxu0 0
        %1316 = vmatpush1.bf16.msra.mxu0 0
        %1317 = vmatprep.subr.bf16.mxu0 0
        %1318 = vmatpush1.bf16.msra.mxu0 0
        %1319 = vmatprep.subr.bf16.mxu0 0
        %1320 = vmatpush1.bf16.msra.mxu0 0
        %1321 = vmatprep.subr.bf16.mxu0 0
        %1322 = vmatpush1.bf16.msra.mxu0 0
        %1323 = vmatprep.subr.bf16.mxu0 0
        %1324 = vmatpush1.bf16.msra.mxu0 0
        %1325 = vmatprep.subr.bf16.mxu0 0
        %1326 = vmatpush1.bf16.msra.mxu0 0
        %1327 = vmatprep.subr.bf16.mxu0 0
        %1328 = vmatpush1.bf16.msra.mxu0 0
        %1329 = vmatprep.subr.bf16.mxu0 0
        %1330 = vmatpush1.bf16.msra.mxu0 0
        %1331 = vmatprep.subr.bf16.mxu0 0
        %1332 = vmatpush1.bf16.msra.mxu0 0
        %1333 = vmatprep.subr.bf16.mxu0 0
        %1334 = vmatpush1.bf16.msra.mxu0 0
        %1335 = vmatprep.subr.bf16.mxu0 0
        %1336 = vmatpush1.bf16.msra.mxu0 0
        %1337 = vmatprep.subr.bf16.mxu0 0
        %1338 = vmatpush1.bf16.msra.mxu0 0
        %1339 = vmatprep.mubr.bf16.mxu0 0
        %1340 = vmatmul.mubr.bf16.gmra.mrb[0].mxu0 %v1302
        %v1341 = vpop.f32.mrb[0].mxu0
        %v1342 = vadd.f32 0.0, %v1341
        %v1343 = vpop.f32.mrb[0].mxu0
        %v1344 = vpop.f32.mrb[0].mxu0
        %v1345 = vpop.f32.mrb[0].mxu0
        %1346 = vdwg.mxu0
        %v1347 = vpack.c.bf16 %v1342, %v1342
        %v1349 = vsel %vm758, %v1347, 0
        %v1352 = vsel %vm822, %v748, 0
        %1354 = vmatprep.subr.bf16.mxu0 0
        %1355 = vmatpush1.bf16.msra.mxu0 %v1352
        %1356 = vmatprep.subr.bf16.mxu0 0
        %1357 = vmatpush1.bf16.msra.mxu0 0
        %1358 = vmatprep.subr.bf16.mxu0 0
        %1359 = vmatpush1.bf16.msra.mxu0 0
        %1360 = vmatprep.subr.bf16.mxu0 0
        %1361 = vmatpush1.bf16.msra.mxu0 0
        %1362 = vmatprep.subr.bf16.mxu0 0
        %1363 = vmatpush1.bf16.msra.mxu0 0
        %1364 = vmatprep.subr.bf16.mxu0 0
        %1365 = vmatpush1.bf16.msra.mxu0 0
        %1366 = vmatprep.subr.bf16.mxu0 0
        %1367 = vmatpush1.bf16.msra.mxu0 0
        %1368 = vmatprep.subr.bf16.mxu0 0
        %1369 = vmatpush1.bf16.msra.mxu0 0
        %1370 = vmatprep.subr.bf16.mxu0 0
        %1371 = vmatpush1.bf16.msra.mxu0 0
        %1372 = vmatprep.subr.bf16.mxu0 0
        %1373 = vmatpush1.bf16.msra.mxu0 0
        %1374 = vmatprep.subr.bf16.mxu0 0
        %1375 = vmatpush1.bf16.msra.mxu0 0
        %1376 = vmatprep.subr.bf16.mxu0 0
        %1377 = vmatpush1.bf16.msra.mxu0 0
        %1378 = vmatprep.subr.bf16.mxu0 0
        %1379 = vmatpush1.bf16.msra.mxu0 0
        %1380 = vmatprep.subr.bf16.mxu0 0
        %1381 = vmatpush1.bf16.msra.mxu0 0
        %1382 = vmatprep.subr.bf16.mxu0 0
        %1383 = vmatpush1.bf16.msra.mxu0 0
        %1384 = vmatprep.subr.bf16.mxu0 0
        %1385 = vmatpush1.bf16.msra.mxu0 0
        %1386 = vmatprep.mubr.bf16.mxu0 0
        %1387 = vmatmul.mubr.bf16.gmra.mrb[0].mxu0 %v1349
        %v1388 = vpop.f32.mrb[0].mxu0
        %v1389 = vadd.f32 0.0, %v1388
        %v1390 = vpop.f32.mrb[0].mxu0
        %v1391 = vpop.f32.mrb[0].mxu0
        %v1392 = vpop.f32.mrb[0].mxu0
        %1393 = vdwg.mxu0
        %v1394 = vadd.f32 %v1234, %v1389
        %v1395 = vld [vmem:[%s6] sm:$0x1]
        %v1397 = vlaneseq
        %v1398 = vshrl.u32 %v1397, 7
        %v1399 = vsub.s32 0, %v1398
        %v1400 = vrot.slane %v1395, %v1399
        %v1402 = vadd.f32 %v1394, %v1400
        %v1403 = vadd.f32 %v563, %v1402
        %v1404 = vld [vmem:[%s11] sm:$0x1]
        %v1405 = vld [vmem:[%s12] sm:$0x1]
        %v1406 = vsel %vm583, %v1403, 0.0
        %1407 = vadd.xlane.f32.xlu0 %v1406
        %v1408 = vpop.xlane.xlu0 %1407
        %v1409 = vrcp.pop 32.0
        %v1410 = vmul.f32 %v1408, %v1409
        %v1411 = vsub.f32 %v1403, %v1410
        %v1412 = vmul.f32 %v1411, %v1411
        %v1413 = vsel %vm583, %v1412, 0.0
        %1414 = vadd.xlane.f32.xlu0 %v1413
        %v1415 = vpop.xlane.xlu0 %1414
        %v1416 = vmul.f32 %v1415, %v1409
        %v1417 = vadd.f32 %v1416, 1e-05
        %v1418 = vrsqrt.pop %v1417
        %v1419 = vmul.f32 %v1411, %v1418
        %v1421 = vlaneseq
        %v1422 = vshrl.u32 %v1421, 7
        %v1423 = vsub.s32 0, %v1422
        %v1424 = vrot.slane %v1404, %v1423
        %v1426 = vmul.f32 %v1419, %v1424
        %v1428 = vlaneseq
        %v1429 = vshrl.u32 %v1428, 7
        %v1430 = vsub.s32 0, %v1429
        %v1431 = vrot.slane %v1405, %v1430
        %v1433 = vadd.f32 %v1426, %v1431
        %v1434 = vpack.c.bf16 %v1433, %v1433
        %v1435 = vld [vmem:[#allocation5] sm:$0xf]
        %v1436 = vld [vmem:[#allocation5 + $0x4] sm:$0xf]
        %v1437 = vld [vmem:[#allocation5 + $0x8] sm:$0xf]
        %v1438 = vld [vmem:[#allocation5 + $0xc] sm:$0xf]
        %v1439 = vld [vmem:[%s8] sm:$0x1]
        %v1441 = vlaneseq
        %v1442 = vshrl.u32 %v1441, 7
        %v1443 = vsub.s32 0, %v1442
        %v1444 = vrot.slane %v1439, %v1443
        %v1450 = vunpack.c.l.b16 %v1435
        %v1451 = vunpack.c.l.b16 %v1436
        %v1452 = vunpack.c.l.b16 %v1437
        %v1453 = vunpack.c.l.b16 %v1438
        %v1454 = vpack.c.b16 %v1451, %v1450
        %v1455 = vpack.c.b16 %v1453, %v1452
        %v1459 = vsel %vm583, %v1434, 0
        %1461 = vmatprep.subr.bf16.mxu0 0
        %1462 = vmatpush1.bf16.msra.mxu0 %v1454
        %1463 = vmatprep.subr.bf16.mxu0 0
        %1464 = vmatpush1.bf16.msra.mxu0 %v1455
        %1465 = vmatprep.subr.bf16.mxu0 0
        %1466 = vmatpush1.bf16.msra.mxu0 0
        %1467 = vmatprep.subr.bf16.mxu0 0
        %1468 = vmatpush1.bf16.msra.mxu0 0
        %1469 = vmatprep.subr.bf16.mxu0 0
        %1470 = vmatpush1.bf16.msra.mxu0 0
        %1471 = vmatprep.subr.bf16.mxu0 0
        %1472 = vmatpush1.bf16.msra.mxu0 0
        %1473 = vmatprep.subr.bf16.mxu0 0
        %1474 = vmatpush1.bf16.msra.mxu0 0
        %1475 = vmatprep.subr.bf16.mxu0 0
        %1476 = vmatpush1.bf16.msra.mxu0 0
        %1477 = vmatprep.subr.bf16.mxu0 0
        %1478 = vmatpush1.bf16.msra.mxu0 0
        %1479 = vmatprep.subr.bf16.mxu0 0
        %1480 = vmatpush1.bf16.msra.mxu0 0
        %1481 = vmatprep.subr.bf16.mxu0 0
        %1482 = vmatpush1.bf16.msra.mxu0 0
        %1483 = vmatprep.subr.bf16.mxu0 0
        %1484 = vmatpush1.bf16.msra.mxu0 0
        %1485 = vmatprep.subr.bf16.mxu0 0
        %1486 = vmatpush1.bf16.msra.mxu0 0
        %1487 = vmatprep.subr.bf16.mxu0 0
        %1488 = vmatpush1.bf16.msra.mxu0 0
        %1489 = vmatprep.subr.bf16.mxu0 0
        %1490 = vmatpush1.bf16.msra.mxu0 0
        %1491 = vmatprep.subr.bf16.mxu0 0
        %1492 = vmatpush1.bf16.msra.mxu0 0
        %1493 = vmatprep.mubr.bf16.mxu0 0
        %1494 = vmatmul.mubr.bf16.gmra.mrb[0].mxu0 %v1459
        %v1495 = vpop.f32.mrb[0].mxu0
        %v1496 = vadd.f32 %v1444, %v1495
        %v1497 = vpop.f32.mrb[0].mxu0
        %v1498 = vpop.f32.mrb[0].mxu0
        %v1499 = vpop.f32.mrb[0].mxu0
        %1500 = vdwg.mxu0
        %v1501 = vmax.f32 %v1496, 0.0
        %v1502 = vpack.c.bf16 %v1501, %v1501
        %v1503 = vld [vmem:[%s9] sm:$0xf]
        %v1504 = vld [vmem:[%s9 + $0x4] sm:$0xf]
        %v1505 = vld [vmem:[%s9 + $0x8] sm:$0xf]
        %v1506 = vld [vmem:[%s9 + $0xc] sm:$0xf]
        %v1507 = vld [vmem:[%s9 + $0x10] sm:$0xf]
        %v1508 = vld [vmem:[%s9 + $0x14] sm:$0xf]
        %v1509 = vld [vmem:[%s9 + $0x18] sm:$0xf]
        %v1510 = vld [vmem:[%s9 + $0x1c] sm:$0xf]
        %v1511 = vld [vmem:[%s9 + $0x20] sm:$0xf]
        %v1512 = vld [vmem:[%s9 + $0x24] sm:$0xf]
        %v1513 = vld [vmem:[%s9 + $0x28] sm:$0xf]
        %v1514 = vld [vmem:[%s9 + $0x2c] sm:$0xf]
        %v1515 = vld [vmem:[%s9 + $0x30] sm:$0xf]
        %v1516 = vld [vmem:[%s9 + $0x34] sm:$0xf]
        %v1517 = vld [vmem:[%s9 + $0x38] sm:$0xf]
        %v1518 = vld [vmem:[%s9 + $0x3c] sm:$0xf]
        %v1519 = vld [vmem:[%s10] sm:$0x1]
        %v1521 = vlaneseq
        %v1522 = vshrl.u32 %v1521, 7
        %v1523 = vsub.s32 0, %v1522
        %v1524 = vrot.slane %v1519, %v1523
        %v1542 = vunpack.c.l.b16 %v1503
        %v1543 = vunpack.c.l.b16 %v1504
        %v1544 = vunpack.c.l.b16 %v1505
        %v1545 = vunpack.c.l.b16 %v1506
        %v1546 = vunpack.c.l.b16 %v1507
        %v1547 = vunpack.c.l.b16 %v1508
        %v1548 = vunpack.c.l.b16 %v1509
        %v1549 = vunpack.c.l.b16 %v1510
        %v1550 = vunpack.c.l.b16 %v1511
        %v1551 = vunpack.c.l.b16 %v1512
        %v1552 = vunpack.c.l.b16 %v1513
        %v1553 = vunpack.c.l.b16 %v1514
        %v1554 = vunpack.c.l.b16 %v1515
        %v1555 = vunpack.c.l.b16 %v1516
        %v1556 = vunpack.c.l.b16 %v1517
        %v1557 = vunpack.c.l.b16 %v1518
        %v1558 = vpack.c.b16 %v1543, %v1542
        %v1559 = vpack.c.b16 %v1545, %v1544
        %v1560 = vpack.c.b16 %v1547, %v1546
        %v1561 = vpack.c.b16 %v1549, %v1548
        %v1562 = vpack.c.b16 %v1551, %v1550
        %v1563 = vpack.c.b16 %v1553, %v1552
        %v1564 = vpack.c.b16 %v1555, %v1554
        %v1565 = vpack.c.b16 %v1557, %v1556
        %1574 = vmatprep.subr.bf16.mxu0 0
        %1575 = vmatpush1.bf16.msra.mxu0 %v1558
        %1576 = vmatprep.subr.bf16.mxu0 0
        %1577 = vmatpush1.bf16.msra.mxu0 %v1559
        %1578 = vmatprep.subr.bf16.mxu0 0
        %1579 = vmatpush1.bf16.msra.mxu0 %v1560
        %1580 = vmatprep.subr.bf16.mxu0 0
        %1581 = vmatpush1.bf16.msra.mxu0 %v1561
        %1582 = vmatprep.subr.bf16.mxu0 0
        %1583 = vmatpush1.bf16.msra.mxu0 %v1562
        %1584 = vmatprep.subr.bf16.mxu0 0
        %1585 = vmatpush1.bf16.msra.mxu0 %v1563
        %1586 = vmatprep.subr.bf16.mxu0 0
        %1587 = vmatpush1.bf16.msra.mxu0 %v1564
        %1588 = vmatprep.subr.bf16.mxu0 0
        %1589 = vmatpush1.bf16.msra.mxu0 %v1565
        %1590 = vmatprep.subr.bf16.mxu0 0
        %1591 = vmatpush1.bf16.msra.mxu0 0
        %1592 = vmatprep.subr.bf16.mxu0 0
        %1593 = vmatpush1.bf16.msra.mxu0 0
        %1594 = vmatprep.subr.bf16.mxu0 0
        %1595 = vmatpush1.bf16.msra.mxu0 0
        %1596 = vmatprep.subr.bf16.mxu0 0
        %1597 = vmatpush1.bf16.msra.mxu0 0
        %1598 = vmatprep.subr.bf16.mxu0 0
        %1599 = vmatpush1.bf16.msra.mxu0 0
        %1600 = vmatprep.subr.bf16.mxu0 0
        %1601 = vmatpush1.bf16.msra.mxu0 0
        %1602 = vmatprep.subr.bf16.mxu0 0
        %1603 = vmatpush1.bf16.msra.mxu0 0
        %1604 = vmatprep.subr.bf16.mxu0 0
        %1605 = vmatpush1.bf16.msra.mxu0 0
        %1606 = vmatprep.mubr.bf16.mxu0 0
        %1607 = vmatmul.mubr.bf16.gmra.mrb[0].mxu0 %v1502
        %v1608 = vpop.f32.mrb[0].mxu0
        %v1609 = vadd.f32 %v1524, %v1608
        %v1610 = vpop.f32.mrb[0].mxu0
        %v1611 = vpop.f32.mrb[0].mxu0
        %v1612 = vpop.f32.mrb[0].mxu0
        %1613 = vdwg.mxu0
        %v1614 = vadd.f32 %v1433, %v1609
        %v1615 = vld [vmem:[%s13] sm:$0x1]
        %v1616 = vld [vmem:[%s14] sm:$0x1]
        %v1617 = vsel %vm583, %v1614, 0.0
        %1618 = vadd.xlane.f32.xlu0 %v1617
        %v1619 = vpop.xlane.xlu0 %1618
        %v1620 = vmul.f32 %v1619, %v1409
        %v1621 = vsub.f32 %v1614, %v1620
        %v1622 = vmul.f32 %v1621, %v1621
        %v1623 = vsel %vm583, %v1622, 0.0
        %1624 = vadd.xlane.f32.xlu0 %v1623
        %v1625 = vpop.xlane.xlu0 %1624
        %v1626 = vmul.f32 %v1625, %v1409
        %v1627 = vadd.f32 %v1626, 1e-05
        %v1628 = vrsqrt.pop %v1627
        %v1629 = vmul.f32 %v1621, %v1628
        %v1631 = vlaneseq
        %v1632 = vshrl.u32 %v1631, 7
        %v1633 = vsub.s32 0, %v1632
        %v1634 = vrot.slane %v1615, %v1633
        %v1636 = vmul.f32 %v1629, %v1634
        %v1638 = vlaneseq
        %v1639 = vshrl.u32 %v1638, 7
        %v1640 = vsub.s32 0, %v1639
        %v1641 = vrot.slane %v1616, %v1640
        %v1643 = vadd.f32 %v1636, %v1641
        %1644 = vst.msk [vmem:[%s550] sm:$0xff] %vm583, %v1643
        %s1645 = sand.u32 %s380, 1
        %s1646 = scalar_lea.sflag [#allocation4], %s1645
        %s1647 = sand.u32 %s380, 1
        %s1648 = smul.addr %s1647, 8
        %s1649 = scalar_lea.vmem [#allocation7], %s1648
        // Predicated region
        $region89: #{tpu_custom_call.1} parent=79 // pred_check
          %p1650 = pneg %p390
        $region90: #{tpu_custom_call.1} parent=79 // pred_check_branch
          %1652 = sbr.rel (%p1650) target = $region92
        $region91: #{tpu_custom_call.1} parent=79 // pred_region
          %s1654 = ssub.s32 128, 128
          %1655 = vsyncadd %s1646, %s1654
          %s1656 = sadd.s32 %s36, %s35
          %s1657 = smul.addr %s1656, 128
          %s1658 = scalar_lea.hbm %s15, %s1657
          %s1660 = sshll.u32 %s1649, 4
          %s1661 = int_to_ptr.vmem [resolvable:$true] %s1660
          %1663 = dma.vmem_to_hbm [thread:$0]  %s1661, 128, %s1658, %s1646
        $region92: #{tpu_custom_call.1} parent=79 // pred_fallthru
          _
      $region80: #{tpu_custom_call.1} parent=5 // pred_fallthru
        _
      %p1664 = scmp.le.s32.totalorder 2, %s26
      // Predicated region
      $region93: #{tpu_custom_call.1} parent=5 // pred_check
        %p1665 = pneg %p1664
      $region94: #{tpu_custom_call.1} parent=5 // pred_check_branch
        %1667 = sbr.rel (%p1665) target = $region96
      $region95: #{tpu_custom_call.1} parent=5 // pred_region
        %s1668 = ssub.s32 %s26, 2
        // Predicated region
        $region97: #{tpu_custom_call.1} parent=95 // pred_check
          %p1669 = pneg %p396
        $region98: #{tpu_custom_call.1} parent=95 // pred_check_branch
          %1671 = sbr.rel (%p1669) target = $region100
        $region99: #{tpu_custom_call.1} parent=95 // pred_region
          %s1672 = sand.u32 %s381, 1
          %s1673 = scalar_lea.sflag [#allocation4], %s1672
          %s1674 = sand.u32 %s381, 1
          %s1675 = smul.addr %s1674, 8
          %s1676 = scalar_lea.vmem [#allocation7], %s1675
          %1677 = dma.done %s1673, 128
        $region100: #{tpu_custom_call.1} parent=95 // pred_fallthru
          _
      $region96: #{tpu_custom_call.1} parent=5 // pred_fallthru
        _
    $region6: #{tpu_custom_call.1} parent=1 // loop_footer
      %s30 = sadd.s32 1, %s26
    $region7: #{tpu_custom_call.1} parent=1 // loop_footer_branch
      %25 = sbr.rel target = $region3
    $region8: #{tpu_custom_call.1} parent=1 // loop_exit
      _
    %1678 = vsyncpa [#allocation3], 1
    %s1679 = scalar_lea.sflag [#allocation3], 1
    %1680 = vsyncpa %s1679, 1
    %1681 = vsyncpa [#allocation6], 1
    %1682 = vsyncpa [#allocation4], 1
    %s1683 = scalar_lea.sflag [#allocation4], 1
    %1684 = vsyncpa %s1683, 1

</llo_original>
